<compile_context>
chip_gen: v7x
topology: tpu7x:2x2x1
jax: 0.10.0
libtpu: 0.0.40
codegen_flags: <defaults>
</compile_context>

<pallas_src>
import numpy as np
import jax
import jax.numpy as jnp
from jax.experimental import pallas as pl
from jax.experimental.pallas import tpu as pltpu

NEG_INF = 1.0e12  # constant.INFINITY_NUMBER
LANE = 128


def _round_up(n, m):
    return ((n + m - 1) // m) * m


def _pad_to(x, shape):
    pads = [(0, s - d) for d, s in zip(x.shape, shape)]
    return jnp.pad(x, pads)


def _choose_batch(B, batch_tile):
    """Pick a batch tile that respects the (8,128) block constraint."""
    if B <= batch_tile:
        return B, B                      # block dim == full array dim is OK
    bt = max(8, (batch_tile // 8) * 8)   # second-to-last block dim must be %8
    Bp = _round_up(B, bt)
    return Bp, bt


# ----------------------------- Fused Pallas kernel -----------------------------

def _make_fused_kernel(gcn_k, mlp_k, mxu_dtype):
    num_layers = len(gcn_k)

    def kernel(adj_ref, x_ref, aux_ref, w_ref, b_ref, out_ref, hout_ref):
        adj = adj_ref[...]                  # (bT, Np, Np)  mxu dtype, pre-normalized
        x = x_ref[...]                      # (bT, Np, Dp)  mxu dtype
        aux = aux_ref[...]                  # (bT, Np, 4)   f32
        inv_denom = aux[:, :, 0:1]          # (bT, Np, 1)   f32
        bT, Np, _ = x.shape

        # ---- GCN layers: h = relu((A_norm @ x) W + 2b * inv_denom) ----
        off = 0
        h32 = None
        for l, k in enumerate(gcn_k):
            w = w_ref[off:off + k, :]               # (k, Hp) static slab slice
            off += k
            b2 = b_ref[l:l + 1, :][None]            # (1, 1, Hp) f32 (pre-doubled)
            ax = jnp.einsum('bij,bjd->bid', adj, x,
                            preferred_element_type=jnp.float32)     # f32 accum
            s = ax.astype(mxu_dtype).reshape(bT * Np, k)            # layout no-op
            h = jnp.dot(s, w, preferred_element_type=jnp.float32)
            h = h.reshape(bT, Np, h.shape[-1])
            h32 = jnp.maximum(h + b2 * inv_denom, 0.0)              # f32 VPU path
            x = h32.astype(mxu_dtype)

        # ---- fused masked max-pools (sentence / subject / object) ----
        # masks are additive 0 / -1e12, precomputed in the wrapper
        pooled = [jnp.max(h32 + aux[:, :, 1 + j:2 + j], axis=1) for j in range(3)]
        hout_ref[...] = pooled[0]                                   # (bT, Hp)
        o = jnp.concatenate(pooled, axis=-1)                        # (bT, 3*Hp) f32

        # ---- fused output MLP (linear + relu, twice) ----
        for l, k in enumerate(mlp_k):
            w = w_ref[off:off + k, :]
            off += k
            b = b_ref[num_layers + l:num_layers + l + 1, :]         # (1, Hp) f32
            o = jnp.maximum(
                jnp.dot(o.astype(mxu_dtype), w,
                        preferred_element_type=jnp.float32) + b, 0.0)
        out_ref[...] = o                                            # (bT, Hp)

    return kernel


def fused_gcn_forward(adj_norm, x0, aux, w_slab, b_slab, *, gcn_k, mlp_k, bT,
                      mxu_dtype):
    Bp, Np, _ = adj_norm.shape
    Dp = x0.shape[-1]
    Ktot, Hp = w_slab.shape
    nb = b_slab.shape[0]
    grid = pl.cdiv(Bp, bT)

    return pl.pallas_call(
        _make_fused_kernel(gcn_k, mlp_k, mxu_dtype),
        out_shape=(jax.ShapeDtypeStruct((Bp, Hp), jnp.float32),
                   jax.ShapeDtypeStruct((Bp, Hp), jnp.float32)),
        grid=(grid,),
        in_specs=[
            pl.BlockSpec((bT, Np, Np), lambda i: (i, 0, 0)),   # adj_norm (streamed)
            pl.BlockSpec((bT, Np, Dp), lambda i: (i, 0, 0)),   # x0       (streamed)
            pl.BlockSpec((bT, Np, 4), lambda i: (i, 0, 0)),    # inv_denom + 3 masks
            pl.BlockSpec((Ktot, Hp), lambda i: (0, 0)),        # packed weight slab
            pl.BlockSpec((nb, Hp), lambda i: (0, 0)),          # packed bias slab
        ],
        out_specs=[pl.BlockSpec((bT, Hp), lambda i: (i, 0)),
                   pl.BlockSpec((bT, Hp), lambda i: (i, 0))],
        compiler_params=pltpu.CompilerParams(
            dimension_semantics=("parallel",),   # megacore split on v7x
            # Toy shapes are tiny; re-derive bT/this limit for v7x (64 MiB VMEM)
            # at realistic SemEval sizes (B~50, N~100, H~200).
            vmem_limit_bytes=32 * 1024 * 1024),
    )(adj_norm, x0, aux, w_slab, b_slab)


# ----------------------------- Model glue -----------------------------

def make_params(key, opt):
    n_pos = opt["n_pos"]
    ks = jax.random.split(key, 16)
    emb = jax.random.uniform(ks[0], (opt["vocab_size"], opt["emb_dim"]),
                             minval=-1.0, maxval=1.0, dtype=jnp.float32)
    emb = emb.at[0].set(0.0)  # padding_idx = PAD_ID = 0
    pos_emb = 0.1 * jax.random.normal(ks[1], (n_pos, opt["pos_dim"]),
                                      dtype=jnp.float32)

    def linear(k, din, dout):
        bound = 1.0 / np.sqrt(din)
        kw, kb = jax.random.split(k)
        w = jax.random.uniform(kw, (dout, din), minval=-bound, maxval=bound,
                               dtype=jnp.float32)
        b = jax.random.uniform(kb, (1, dout), minval=-bound, maxval=bound,
                               dtype=jnp.float32)
        return w.T, b  # store W^T for kernel use

    in_dim = opt["emb_dim"] + opt["pos_dim"]
    gcn_w, gcn_b = [], []
    for l in range(opt["num_layers"]):
        din = in_dim if l == 0 else opt["hidden_dim"]
        wt, b = linear(ks[2 + l], din, opt["hidden_dim"])
        gcn_w.append(wt)
        gcn_b.append(b)

    mlp = []
    din = opt["hidden_dim"] * 3
    for l in range(opt["mlp_layers"]):
        wt, b = linear(ks[8 + l], din, opt["hidden_dim"])
        mlp.append((wt, b))
        din = opt["hidden_dim"]

    return {"emb": emb, "pos_emb": pos_emb, "gcn_w": gcn_w, "gcn_b": gcn_b,
            "mlp": mlp}


def build_adj(head_np, lens, maxlen):
    # tree_to_adj(directed=False, self_loop=True); head is 1-based, 0 = root.
    # TODO(synk): prune_k-based tree pruning (head_to_tree) not implemented; full tree used (prune_k=-1).
    B = head_np.shape[0]
    adj = np.zeros((B, maxlen, maxlen), dtype=np.float32)
    for b in range(B):
        for i in range(lens[b]):
            h = int(head_np[b, i])
            if h > 0:
                adj[b, i, h - 1] = 1.0
                adj[b, h - 1, i] = 1.0
        for i in range(lens[b]):
            adj[b, i, i] = 1.0
    return adj


def gcn_relation_forward(params, opt, adj, inputs, *, batch_tile=8,
                         mxu_dtype=jnp.bfloat16):
    words, masks, pos, deprel, head, subj_pos, obj_pos = inputs
    B, N = words.shape
    H = opt["hidden_dim"]
    Hp = _round_up(H, LANE)
    in_dim = opt["emb_dim"] + opt["pos_dim"]
    Dp = _round_up(in_dim, LANE)
    Np = _round_up(N, 16)            # sublane multiple (16 covers bf16 packing)
    Bp, bT = _choose_batch(B, batch_tile)

    # ---- embeddings (gather = glue), zero-padded to lane-dense Dp ----
    word_embs = params["emb"][words]                 # (B, N, emb_dim)
    pos_embs = params["pos_emb"][pos]                # (B, N, pos_dim)
    gcn_inputs = jnp.concatenate([word_embs, pos_embs], axis=2)  # (B, N, in_dim)

    # ---- adjacency prep: pre-normalize (A + I) / denom in the wrapper ----
    adj_matrix = jnp.where(adj != 0, 1.0, 0.0).astype(jnp.float32)
    denom = adj_matrix.sum(2, keepdims=True) + 1.0               # (B, N, 1)
    inv_denom = 1.0 / denom
    adj_norm = (adj_matrix + jnp.eye(N, dtype=jnp.float32)[None]) * inv_denom
    pool_mask = ((adj_matrix.sum(2) + adj_matrix.sum(1)) == 0)   # (B, N)

    # additive pool masks (0 keep / -1e12 drop), packed with inv_denom
    m_sent = jnp.where(pool_mask[..., None], -NEG_INF, 0.0)
    m_subj = jnp.where((subj_pos != 0)[..., None], -NEG_INF, 0.0)
    m_obj = jnp.where((obj_pos != 0)[..., None], -NEG_INF, 0.0)
    aux = jnp.concatenate([inv_denom, m_sent, m_subj, m_obj], axis=-1)
    aux = jnp.pad(aux, ((0, Bp - B), (0, Np - N), (0, 0))).astype(jnp.float32)
    if Np > N:
        aux = aux.at[:, N:, 1:].set(-NEG_INF)   # padded tokens never pooled

    x0 = _pad_to(gcn_inputs, (Bp, Np, Dp)).astype(mxu_dtype)
    adj_p = _pad_to(adj_norm, (Bp, Np, Np)).astype(mxu_dtype)

    # ---- pack all weights / biases into two lane-dense slabs ----
    gcn_k = [Dp] + [Hp] * (opt["num_layers"] - 1)
    mlp_k = [3 * Hp] + [Hp] * (opt["mlp_layers"] - 1)
    w_parts, b_rows = [], []
    for l in range(opt["num_layers"]):
        w_parts.append(_pad_to(params["gcn_w"][l], (gcn_k[l], Hp)))
        b_rows.append(_pad_to(2.0 * params["gcn_b"][l], (1, Hp)))  # pre-doubled
    for l, (wt, b) in enumerate(params["mlp"]):
        if l == 0:
            # first layer's 3 input blocks placed at offsets 0, Hp, 2*Hp to line
            # up with the lane-padded concat of the three pooled vectors
            w_p = jnp.zeros((3 * Hp, Hp), jnp.float32)
            for k in range(3):
                w_p = w_p.at[k * Hp:k * Hp + H, :H].set(wt[k * H:(k + 1) * H, :])
        else:
            w_p = _pad_to(wt, (Hp, Hp))
        w_parts.append(w_p)
        b_rows.append(_pad_to(b, (1, Hp)))
    w_slab = jnp.concatenate(w_parts, axis=0).astype(mxu_dtype)
    nb = _round_up(len(b_rows), 8)
    b_slab = jnp.concatenate(
        b_rows + [jnp.zeros((nb - len(b_rows), Hp), jnp.float32)], axis=0)

    out_pad, hout_pad = fused_gcn_forward(
        adj_p, x0, aux, w_slab, b_slab,
        gcn_k=gcn_k, mlp_k=mlp_k, bT=bT, mxu_dtype=mxu_dtype)

    return out_pad[:B, :H], hout_pad[:B, :H]


# ----------------------------- References -----------------------------

def reference_forward(params, opt, adj, inputs):
    """Pure-f32 reference matching the PyTorch module semantics exactly."""
    words, masks, pos, deprel, head, subj_pos, obj_pos = inputs
    x = jnp.concatenate([params["emb"][words], params["pos_emb"][pos]], axis=2)
    adj_matrix = jnp.where(adj != 0, 1.0, 0.0).astype(jnp.float32)
    denom = adj_matrix.sum(2, keepdims=True) + 1.0
    pool_mask = ((adj_matrix.sum(2) + adj_matrix.sum(1)) == 0)[..., None]
    for l in range(opt["num_layers"]):
        Ax = jnp.einsum("bij,bjd->bid", adj_matrix, x)
        AxW = (Ax @ params["gcn_w"][l] + params["gcn_b"][l]
               + x @ params["gcn_w"][l] + params["gcn_b"][l])
        x = jnp.maximum(AxW / denom, 0.0)
    h = x

    def pool_max(hh, m):
        return jnp.max(jnp.where(m, -NEG_INF, hh), axis=1)

    h_out = pool_max(h, pool_mask)
    subj_out = pool_max(h, (subj_pos != 0)[..., None])
    obj_out = pool_max(h, (obj_pos != 0)[..., None])
    out = jnp.concatenate([h_out, subj_out, obj_out], axis=1)
    for (wt, b) in params["mlp"]:
        out = jnp.maximum(out @ wt + b, 0.0)
    return out, h_out


def reference_forward_quantized(params, opt, adj, inputs, mxu_dtype=jnp.bfloat16):
    """Reference that mirrors the kernel's bf16-MXU / f32-accumulate math."""
    words, masks, pos, deprel, head, subj_pos, obj_pos = inputs
    x = jnp.concatenate([params["emb"][words], params["pos_emb"][pos]], axis=2)
    N = adj.shape[1]
    adj_matrix = jnp.where(adj != 0, 1.0, 0.0).astype(jnp.float32)
    denom = adj_matrix.sum(2, keepdims=True) + 1.0
    inv_denom = 1.0 / denom
    adj_norm = ((adj_matrix + jnp.eye(N, dtype=jnp.float32)[None]) * inv_denom
                ).astype(mxu_dtype)
    pool_mask = ((adj_matrix.sum(2) + adj_matrix.sum(1)) == 0)[..., None]

    x_c = x.astype(mxu_dtype)
    h32 = None
    for l in range(opt["num_layers"]):
        ax = jnp.einsum("bij,bjd->bid", adj_norm, x_c,
                        preferred_element_type=jnp.float32)
        h = jnp.einsum("bnd,dh->bnh", ax.astype(mxu_dtype),
                       params["gcn_w"][l].astype(mxu_dtype),
                       preferred_element_type=jnp.float32)
        h32 = jnp.maximum(h + 2.0 * params["gcn_b"][l] * inv_denom, 0.0)
        x_c = h32.astype(mxu_dtype)

    def pool_max(hh, m):
        return jnp.max(jnp.where(m, -NEG_INF, hh), axis=1)

    h_out = pool_max(h32, pool_mask)
    subj_out = pool_max(h32, (subj_pos != 0)[..., None])
    obj_out = pool_max(h32, (obj_pos != 0)[..., None])
    o = jnp.concatenate([h_out, subj_out, obj_out], axis=1)
    for (wt, b) in params["mlp"]:
        o = jnp.maximum(
            jnp.dot(o.astype(mxu_dtype), wt.astype(mxu_dtype),
                    preferred_element_type=jnp.float32) + b, 0.0)
    return o, h_out


if __name__ == "__main__":
    opt = dict(vocab_size=50, emb_dim=24, pos_dim=8, ner_dim=0, n_pos=10,
               hidden_dim=32, num_layers=2, mlp_layers=2,
               dataset="semeval", adj_type="regular", pooling="max", prune_k=-1)
    B, N = 16, 10   # batch grid of 2 steps with batch_tile=8; N padded to 16

    params = make_params(jax.random.PRNGKey(0), opt)

    kw, kp, kd = jax.random.split(jax.random.PRNGKey(1), 3)
    lens = np.full((B,), N, dtype=np.int64)
    lens[1::2] = N - 3                       # some shorter sentences

    masks_np = np.zeros((B, N), dtype=np.int32)
    for b in range(B):
        masks_np[b, lens[b]:] = 1            # 1 = PAD
    words = jax.random.randint(kw, (B, N), 1, opt["vocab_size"], dtype=jnp.int32)
    words = jnp.where(jnp.asarray(masks_np) == 1, 0, words)
    masks = jnp.asarray(masks_np)
    pos = jax.random.randint(kp, (B, N), 0, opt["n_pos"], dtype=jnp.int32)
    deprel = jax.random.randint(kd, (B, N), 0, 5, dtype=jnp.int32)

    # simple chain tree per example: token 0 is root, token i's head is token i (1-based)
    head_np = np.tile(np.arange(N, dtype=np.int64), (B, 1))
    for b in range(B):
        head_np[b, lens[b]:] = 0

    subj_pos_np = np.tile(np.arange(N, dtype=np.int64)[None, :] - 1, (B, 1))  # subj @ idx 1
    obj_pos_np = np.tile(np.arange(N, dtype=np.int64)[None, :] - 4, (B, 1))   # obj  @ idx 4
    subj_pos = jnp.asarray(subj_pos_np.astype(np.int32))
    obj_pos = jnp.asarray(obj_pos_np.astype(np.int32))

    adj = jnp.asarray(build_adj(head_np, lens, N))
    inputs = (words, masks, pos, deprel, jnp.asarray(head_np.astype(np.int32)),
              subj_pos, obj_pos)

    outputs, h_out = gcn_relation_forward(params, opt, adj, inputs,
                                          batch_tile=8, mxu_dtype=jnp.bfloat16)
    outputs = jax.block_until_ready(outputs)
    h_out = jax.block_until_ready(h_out)
    assert outputs.shape == (B, opt["hidden_dim"])
    assert h_out.shape == (B, opt["hidden_dim"])

    # Tight structural check vs. a reference using the same bf16/f32 arithmetic.
    q_out, q_h = reference_forward_quantized(params, opt, adj, inputs)
    np.testing.assert_allclose(np.asarray(outputs), np.asarray(q_out),
                               rtol=2e-3, atol=2e-3)
    np.testing.assert_allclose(np.asarray(h_out), np.asarray(q_h),
                               rtol=2e-3, atol=2e-3)

    # End-to-end check vs. the pure-f32 module semantics (bf16-level tolerance).
    ref_out, ref_h = reference_forward(params, opt, adj, inputs)
    np.testing.assert_allclose(np.asarray(outputs), np.asarray(ref_out),
                               rtol=5e-2, atol=5e-2)
    np.testing.assert_allclose(np.asarray(h_out), np.asarray(ref_h),
                               rtol=5e-2, atol=5e-2)

    print("KERNEL_OK")
</pallas_src>

<mosaic_0001>
module attributes {stable_mosaic.version = 11 : i64} {
  func.func @kernel(%arg0: i32, %arg1: memref<8x16x16xbf16, #tpu.memory_space<vmem>>, %arg2: memref<8x16x128xbf16, #tpu.memory_space<vmem>>, %arg3: memref<8x16x4xf32, #tpu.memory_space<vmem>>, %arg4: memref<768x128xbf16, #tpu.memory_space<vmem>>, %arg5: memref<8x128xf32, #tpu.memory_space<vmem>>, %arg6: memref<8x128xf32, #tpu.memory_space<vmem>>, %arg7: memref<8x128xf32, #tpu.memory_space<vmem>>) attributes {dimension_semantics = [#tpu.dimension_semantics<parallel>], iteration_bounds = array<i64: 2>, scalar_prefetch = 0 : i64, scratch_operands = 0 : i64, tpu.core_type = #tpu.core_type<tc>, window_params = [{transform_indices = @transform_0, window_bounds = array<i64: 8, 16, 16>}, {transform_indices = @transform_1, window_bounds = array<i64: 8, 16, 128>}, {transform_indices = @transform_2, window_bounds = array<i64: 8, 16, 4>}, {pipeline_mode = #tpu.pipeline_mode<synchronous>, transform_indices = @transform_3, window_bounds = array<i64: 768, 128>}, {pipeline_mode = #tpu.pipeline_mode<synchronous>, transform_indices = @transform_4, window_bounds = array<i64: 8, 128>}, {transform_indices = @transform_5, window_bounds = array<i64: 8, 128>}, {transform_indices = @transform_6, window_bounds = array<i64: 8, 128>}]} {
    %c0 = arith.constant 0 : index
    %c0_0 = arith.constant 0 : index
    %c0_1 = arith.constant 0 : index
    %0 = vector.load %arg1[%c0, %c0_0, %c0_1] : memref<8x16x16xbf16, #tpu.memory_space<vmem>>, vector<8x16x16xbf16>
    %c0_2 = arith.constant 0 : index
    %c0_3 = arith.constant 0 : index
    %c0_4 = arith.constant 0 : index
    %1 = vector.load %arg2[%c0_2, %c0_3, %c0_4] : memref<8x16x128xbf16, #tpu.memory_space<vmem>>, vector<8x16x128xbf16>
    %c0_5 = arith.constant 0 : index
    %c0_6 = arith.constant 0 : index
    %c0_7 = arith.constant 0 : index
    %2 = vector.load %arg3[%c0_5, %c0_6, %c0_7] : memref<8x16x4xf32, #tpu.memory_space<vmem>>, vector<8x16x4xf32>
    %3 = vector.extract_strided_slice %2 {offsets = [0, 0, 0], sizes = [8, 16, 1], strides = [1, 1, 1]} : vector<8x16x4xf32> to vector<8x16x1xf32>
    %c0_8 = arith.constant 0 : index
    %c0_9 = arith.constant 0 : index
    %4 = vector.load %arg4[%c0_8, %c0_9] : memref<768x128xbf16, #tpu.memory_space<vmem>>, vector<128x128xbf16>
    %c0_10 = arith.constant 0 : index
    %c0_11 = arith.constant 0 : index
    %5 = vector.load %arg5[%c0_10, %c0_11] : memref<8x128xf32, #tpu.memory_space<vmem>>, vector<1x128xf32>
    %6 = vector.shape_cast %5 : vector<1x128xf32> to vector<1x1x128xf32>
    "tpu.trace_start"() <{level = 10 : i32, message = "bij,bjd->bid"}> : () -> ()
    %cst = arith.constant dense<0.000000e+00> : vector<8x16x128xf32>
    %7 = tpu.matmul %0, %1, %cst {dimension_numbers = #tpu.dot_dimension_numbers<[2], [1], [1], [2], [0, 0, 0, 1, 1, 2], [0], [0]>} : vector<8x16x16xbf16>, vector<8x16x128xbf16>, vector<8x16x128xf32> -> vector<8x16x128xf32>
    "tpu.trace_stop"() : () -> ()
    %8 = arith.truncf %7 : vector<8x16x128xf32> to vector<8x16x128xbf16>
    %9 = vector.shape_cast %8 : vector<8x16x128xbf16> to vector<128x128xbf16>
    %cst_12 = arith.constant dense<0.000000e+00> : vector<128x128xf32>
    %10 = tpu.matmul %9, %4, %cst_12 {dimension_numbers = #tpu.dot_dimension_numbers<[1], [0], [0], [1], [0, 0, 1, 1], [], []>} : vector<128x128xbf16>, vector<128x128xbf16>, vector<128x128xf32> -> vector<128x128xf32>
    %11 = vector.shape_cast %10 : vector<128x128xf32> to vector<8x16x128xf32>
    %12 = vector.broadcast %6 : vector<1x1x128xf32> to vector<8x16x128xf32>
    %13 = vector.broadcast %3 : vector<8x16x1xf32> to vector<8x16x128xf32>
    %14 = arith.mulf %12, %13 : vector<8x16x128xf32>
    %15 = arith.addf %11, %14 : vector<8x16x128xf32>
    %cst_13 = arith.constant 0.000000e+00 : f32
    %16 = vector.broadcast %cst_13 : f32 to vector<8x16x128xf32>
    %17 = arith.maximumf %15, %16 : vector<8x16x128xf32>
    %18 = arith.truncf %17 : vector<8x16x128xf32> to vector<8x16x128xbf16>
    %c128 = arith.constant 128 : index
    %c0_14 = arith.constant 0 : index
    %19 = vector.load %arg4[%c128, %c0_14] : memref<768x128xbf16, #tpu.memory_space<vmem>>, vector<128x128xbf16>
    %c1 = arith.constant 1 : index
    %c0_15 = arith.constant 0 : index
    %20 = vector.load %arg5[%c1, %c0_15] : memref<8x128xf32, #tpu.memory_space<vmem>>, vector<1x128xf32>
    %21 = vector.shape_cast %20 : vector<1x128xf32> to vector<1x1x128xf32>
    "tpu.trace_start"() <{level = 10 : i32, message = "bij,bjd->bid"}> : () -> ()
    %cst_16 = arith.constant dense<0.000000e+00> : vector<8x16x128xf32>
    %22 = tpu.matmul %0, %18, %cst_16 {dimension_numbers = #tpu.dot_dimension_numbers<[2], [1], [1], [2], [0, 0, 0, 1, 1, 2], [0], [0]>} : vector<8x16x16xbf16>, vector<8x16x128xbf16>, vector<8x16x128xf32> -> vector<8x16x128xf32>
    "tpu.trace_stop"() : () -> ()
    %23 = arith.truncf %22 : vector<8x16x128xf32> to vector<8x16x128xbf16>
    %24 = vector.shape_cast %23 : vector<8x16x128xbf16> to vector<128x128xbf16>
    %cst_17 = arith.constant dense<0.000000e+00> : vector<128x128xf32>
    %25 = tpu.matmul %24, %19, %cst_17 {dimension_numbers = #tpu.dot_dimension_numbers<[1], [0], [0], [1], [0, 0, 1, 1], [], []>} : vector<128x128xbf16>, vector<128x128xbf16>, vector<128x128xf32> -> vector<128x128xf32>
    %26 = vector.shape_cast %25 : vector<128x128xf32> to vector<8x16x128xf32>
    %27 = vector.broadcast %21 : vector<1x1x128xf32> to vector<8x16x128xf32>
    %28 = vector.broadcast %3 : vector<8x16x1xf32> to vector<8x16x128xf32>
    %29 = arith.mulf %27, %28 : vector<8x16x128xf32>
    %30 = arith.addf %26, %29 : vector<8x16x128xf32>
    %cst_18 = arith.constant 0.000000e+00 : f32
    %31 = vector.broadcast %cst_18 : f32 to vector<8x16x128xf32>
    %32 = arith.maximumf %30, %31 : vector<8x16x128xf32>
    %33 = vector.extract_strided_slice %2 {offsets = [0, 0, 1], sizes = [8, 16, 1], strides = [1, 1, 1]} : vector<8x16x4xf32> to vector<8x16x1xf32>
    %34 = vector.broadcast %33 : vector<8x16x1xf32> to vector<8x16x128xf32>
    %35 = arith.addf %32, %34 : vector<8x16x128xf32>
    %cst_19 = arith.constant dense<0xFF800000> : vector<8x128xf32>
    %36 = vector.multi_reduction <maximumf>, %35, %cst_19 [1] : vector<8x16x128xf32> to vector<8x128xf32>
    %37 = vector.extract_strided_slice %2 {offsets = [0, 0, 2], sizes = [8, 16, 1], strides = [1, 1, 1]} : vector<8x16x4xf32> to vector<8x16x1xf32>
    %38 = vector.broadcast %37 : vector<8x16x1xf32> to vector<8x16x128xf32>
    %39 = arith.addf %32, %38 : vector<8x16x128xf32>
    %cst_20 = arith.constant dense<0xFF800000> : vector<8x128xf32>
    %40 = vector.multi_reduction <maximumf>, %39, %cst_20 [1] : vector<8x16x128xf32> to vector<8x128xf32>
    %41 = vector.extract_strided_slice %2 {offsets = [0, 0, 3], sizes = [8, 16, 1], strides = [1, 1, 1]} : vector<8x16x4xf32> to vector<8x16x1xf32>
    %42 = vector.broadcast %41 : vector<8x16x1xf32> to vector<8x16x128xf32>
    %43 = arith.addf %32, %42 : vector<8x16x128xf32>
    %cst_21 = arith.constant dense<0xFF800000> : vector<8x128xf32>
    %44 = vector.multi_reduction <maximumf>, %43, %cst_21 [1] : vector<8x16x128xf32> to vector<8x128xf32>
    %c0_22 = arith.constant 0 : index
    %c0_23 = arith.constant 0 : index
    %45 = vector.load %arg7[%c0_22, %c0_23] : memref<8x128xf32, #tpu.memory_space<vmem>>, vector<8x128xf32>
    tpu.vector_store %arg7[%c0_22, %c0_23], %36 {strides = array<i32>} : memref<8x128xf32, #tpu.memory_space<vmem>>, vector<8x128xf32>,
    %46 = tpu.concatenate %36, %40, %44 in 1 : vector<8x128xf32>, vector<8x128xf32>, vector<8x128xf32> -> vector<8x384xf32>
    %c256 = arith.constant 256 : index
    %c0_24 = arith.constant 0 : index
    %47 = vector.load %arg4[%c256, %c0_24] : memref<768x128xbf16, #tpu.memory_space<vmem>>, vector<384x128xbf16>
    %c2 = arith.constant 2 : index
    %c0_25 = arith.constant 0 : index
    %48 = vector.load %arg5[%c2, %c0_25] : memref<8x128xf32, #tpu.memory_space<vmem>>, vector<1x128xf32>
    %49 = arith.truncf %46 : vector<8x384xf32> to vector<8x384xbf16>
    %cst_26 = arith.constant dense<0.000000e+00> : vector<8x128xf32>
    %50 = tpu.matmul %49, %47, %cst_26 {dimension_numbers = #tpu.dot_dimension_numbers<[1], [0], [0], [1], [0, 0, 1, 1], [], []>} : vector<8x384xbf16>, vector<384x128xbf16>, vector<8x128xf32> -> vector<8x128xf32>
    %51 = vector.broadcast %48 : vector<1x128xf32> to vector<8x128xf32>
    %52 = arith.addf %50, %51 : vector<8x128xf32>
    %cst_27 = arith.constant 0.000000e+00 : f32
    %53 = vector.broadcast %cst_27 : f32 to vector<8x128xf32>
    %54 = arith.maximumf %52, %53 : vector<8x128xf32>
    %c640 = arith.constant 640 : index
    %c0_28 = arith.constant 0 : index
    %55 = vector.load %arg4[%c640, %c0_28] : memref<768x128xbf16, #tpu.memory_space<vmem>>, vector<128x128xbf16>
    %c3 = arith.constant 3 : index
    %c0_29 = arith.constant 0 : index
    %56 = vector.load %arg5[%c3, %c0_29] : memref<8x128xf32, #tpu.memory_space<vmem>>, vector<1x128xf32>
    %57 = arith.truncf %54 : vector<8x128xf32> to vector<8x128xbf16>
    %cst_30 = arith.constant dense<0.000000e+00> : vector<8x128xf32>
    %58 = tpu.matmul %57, %55, %cst_30 {dimension_numbers = #tpu.dot_dimension_numbers<[1], [0], [0], [1], [0, 0, 1, 1], [], []>} : vector<8x128xbf16>, vector<128x128xbf16>, vector<8x128xf32> -> vector<8x128xf32>
    %59 = vector.broadcast %56 : vector<1x128xf32> to vector<8x128xf32>
    %60 = arith.addf %58, %59 : vector<8x128xf32>
    %cst_31 = arith.constant 0.000000e+00 : f32
    %61 = vector.broadcast %cst_31 : f32 to vector<8x128xf32>
    %62 = arith.maximumf %60, %61 : vector<8x128xf32>
    %c0_32 = arith.constant 0 : index
    %c0_33 = arith.constant 0 : index
    %63 = vector.load %arg6[%c0_32, %c0_33] : memref<8x128xf32, #tpu.memory_space<vmem>>, vector<8x128xf32>
    tpu.vector_store %arg6[%c0_32, %c0_33], %62 {strides = array<i32>} : memref<8x128xf32, #tpu.memory_space<vmem>>, vector<8x128xf32>,
    return
  }
  func.func @transform_0(%arg0: i32) -> (i32, i32, i32) {
    %c0_i32 = arith.constant 0 : i32
    %c0_i32_0 = arith.constant 0 : i32
    %c0_i32_1 = arith.constant 0 : i32
    return %arg0, %c0_i32, %c0_i32_0 : i32, i32, i32
  }
  func.func @transform_1(%arg0: i32) -> (i32, i32, i32) {
    %c0_i32 = arith.constant 0 : i32
    %c0_i32_0 = arith.constant 0 : i32
    %c0_i32_1 = arith.constant 0 : i32
    return %arg0, %c0_i32, %c0_i32_0 : i32, i32, i32
  }
  func.func @transform_2(%arg0: i32) -> (i32, i32, i32) {
    %c0_i32 = arith.constant 0 : i32
    %c0_i32_0 = arith.constant 0 : i32
    %c0_i32_1 = arith.constant 0 : i32
    return %arg0, %c0_i32, %c0_i32_0 : i32, i32, i32
  }
  func.func @transform_3(%arg0: i32) -> (i32, i32) {
    %c0_i32 = arith.constant 0 : i32
    %c0_i32_0 = arith.constant 0 : i32
    %c0_i32_1 = arith.constant 0 : i32
    return %c0_i32, %c0_i32_0 : i32, i32
  }
  func.func @transform_4(%arg0: i32) -> (i32, i32) {
    %c0_i32 = arith.constant 0 : i32
    %c0_i32_0 = arith.constant 0 : i32
    %c0_i32_1 = arith.constant 0 : i32
    return %c0_i32, %c0_i32_0 : i32, i32
  }
  func.func @transform_5(%arg0: i32) -> (i32, i32) {
    %c0_i32 = arith.constant 0 : i32
    %c0_i32_0 = arith.constant 0 : i32
    return %arg0, %c0_i32 : i32, i32
  }
  func.func @transform_6(%arg0: i32) -> (i32, i32) {
    %c0_i32 = arith.constant 0 : i32
    %c0_i32_0 = arith.constant 0 : i32
    return %arg0, %c0_i32 : i32, i32
  }
}

</mosaic_0001>

<llo_original>
// kernel: tpu_custom_call.1
$region0: #{tpu_custom_call.1}
  #allocation0 [shape = 'u32[]', space=smem, size = 0x4, offset = 0x4, fixed_abs, tag = 'smem constant byte address 0x4 - core index']
  #allocation1 [shape = 'u32[144,128]{1,0:T(1,128)}', space=vmem, size = 0x12000, scoped, tag = 'internal scratch']
  %s0 = inlined_call_operand.vmem [shape: bf16[16,16,16], index: 0, kind: input, shape index: {}]
  %s1 = inlined_call_operand.vmem [shape: bf16[16,16,128], index: 1, kind: input, shape index: {}]
  %s2 = inlined_call_operand.vmem [shape: f32[16,16,4], index: 2, kind: input, shape index: {}]
  %s3 = inlined_call_operand.hbm [shape: bf16[768,128], index: 3, kind: input, shape index: {}]
  %s4 = inlined_call_operand.vmem [shape: f32[8,128], index: 4, kind: input, shape index: {}]
  %s5 = inlined_call_operand.hbm [shape: f32[16,128], index: 5, kind: output, shape index: {0}]
  %s6 = inlined_call_operand.hbm [shape: f32[16,128], index: 6, kind: output, shape index: {1}]
  %7 = xla_tuple %s5, %s6
  %s8 = sld [smem:[#allocation0]]
  $region65: #{tpu_custom_call.1} parent=0
    _
  %s10 = ssub.s32 1, %s8
  %s11 = scalar_select 0, %s10, %s8
  $region1: #{tpu_custom_call.1} parent=0
    #allocation2 [shape = 'u8[196608]{0}', space=vmem, size = 0x30000, scoped, tag = 'input window, operand 3, single buffered']
    #allocation3 [shape = 's32[2]{0}', space=sflag, size = 0x8, scoped, tag = 'scoped memory for tpu_custom_call.1']
    #allocation4 [shape = 's32[2]{0}', space=sflag, size = 0x8, scoped, tag = 'scoped memory for tpu_custom_call.1']
    #allocation5 [shape = 'u8[8192]{0}', space=vmem, size = 0x2000, scoped, tag = 'output window, operand 0']
    #allocation6 [shape = 'u8[8192]{0}', space=vmem, size = 0x2000, scoped, tag = 'output window, operand 1']
    #allocation7 [shape = 's32[2]{0}', space=sflag, size = 0x8, scoped, tag = 'scoped memory for tpu_custom_call.1']
    %12 = vsyncpa [#allocation3], 0
    %13 = vsyncpa [#allocation4], 0
    %s14 = scalar_lea.sflag [#allocation4], 1
    %15 = vsyncpa %s14, 0
    %16 = vsyncpa [#allocation7], 0
    %s17 = scalar_lea.sflag [#allocation7], 1
    %18 = vsyncpa %s17, 0
    loop: start=0, step=1, limit=4
    $region2: #{tpu_custom_call.1} parent=1 // loop_pre_header
      _
    $region3: #{tpu_custom_call.1} parent=1 // loop_header
      %s20 = sphi 0, %s24
      %p21 = scmp.ge.s32.totalorder %s20, 4
      %s30 = sphi 0, %s32
      %s33 = sphi 0, %s30
      %s34 = sphi 0, %s33
      %s50 = sphi 0, %s34
      %s56 = sphi 0, %s58
      %s59 = sphi 0, %s56
      %s60 = sphi 0, %s59
      %s76 = sphi 0, %s60
      %s82 = sphi 0, %s84
      %s85 = sphi 0, %s82
      %s86 = sphi 0, %s85
      %s102 = sphi 0, %s86
      %s106 = sphi 0, %s106
      %s108 = sphi 0, %s106
      %s109 = sphi 0, %s108
      %s123 = sphi 0, %s109
      %s127 = sphi 0, %s127
      %s129 = sphi 0, %s127
      %s130 = sphi 0, %s129
      %s144 = sphi 0, %s130
      %s150 = sphi 0, %s152
      %s153 = sphi 0, %s150
      %s154 = sphi 0, %s153
      %s170 = sphi 0, %s154
      %s176 = sphi 0, %s178
      %s179 = sphi 0, %s176
      %s180 = sphi 0, %s179
      %s196 = sphi 0, %s180
    $region4: #{tpu_custom_call.1} parent=1 // loop_header_branch
      %23 = sbr.rel (%p21) target = $region8
    $region5: #{tpu_custom_call.1} parent=1 // loop_body
      %s25 = ssub.s32 %s20, 1
      %s26 = ssub.s32 %s20, 2
      %s27 = sadd.s32 %s20, 1
      %s28 = ssub.s32 %s20, %s27
      %p29 = scmp.eq.s32.totalorder %s28, 0
      %s31 = sadd.s32 %s30, 1
      %s32 = scalar_select %p29, %s30, %s31
      %p35 = pneg %p29
      %p36 = scmp.eq.s32.totalorder %s20, 1
      %p37 = por %p35, %p36
      %p38 = scmp.ne.s32.totalorder %s30, %s33
      %p39 = scmp.eq.s32.totalorder %s20, 0
      %p40 = por %p38, %p39
      %p41 = scmp.ne.s32.totalorder %s30, %s33
      %p42 = scmp.eq.s32.totalorder %s25, 1
      %p43 = por %p41, %p42
      %p44 = scmp.ne.s32.totalorder %s33, %s34
      %p45 = scmp.eq.s32.totalorder %s25, 0
      %p46 = por %p44, %p45
      %p47 = scmp.ne.s32.totalorder %s33, %s34
      %p48 = scmp.eq.s32.totalorder %s26, 1
      %p49 = por %p47, %p48
      %p51 = scmp.ne.s32.totalorder %s34, %s50
      %p52 = scmp.eq.s32.totalorder %s26, 0
      %p53 = por %p51, %p52
      %s54 = ssub.s32 %s20, %s27
      %p55 = scmp.eq.s32.totalorder %s54, 0
      %s57 = sadd.s32 %s56, 1
      %s58 = scalar_select %p55, %s56, %s57
      %p61 = pneg %p55
      %p62 = scmp.eq.s32.totalorder %s20, 1
      %p63 = por %p61, %p62
      %p64 = scmp.ne.s32.totalorder %s56, %s59
      %p65 = scmp.eq.s32.totalorder %s20, 0
      %p66 = por %p64, %p65
      %p67 = scmp.ne.s32.totalorder %s56, %s59
      %p68 = scmp.eq.s32.totalorder %s25, 1
      %p69 = por %p67, %p68
      %p70 = scmp.ne.s32.totalorder %s59, %s60
      %p71 = scmp.eq.s32.totalorder %s25, 0
      %p72 = por %p70, %p71
      %p73 = scmp.ne.s32.totalorder %s59, %s60
      %p74 = scmp.eq.s32.totalorder %s26, 1
      %p75 = por %p73, %p74
      %p77 = scmp.ne.s32.totalorder %s60, %s76
      %p78 = scmp.eq.s32.totalorder %s26, 0
      %p79 = por %p77, %p78
      %s80 = ssub.s32 %s20, %s27
      %p81 = scmp.eq.s32.totalorder %s80, 0
      %s83 = sadd.s32 %s82, 1
      %s84 = scalar_select %p81, %s82, %s83
      %p87 = pneg %p81
      %p88 = scmp.eq.s32.totalorder %s20, 1
      %p89 = por %p87, %p88
      %p90 = scmp.ne.s32.totalorder %s82, %s85
      %p91 = scmp.eq.s32.totalorder %s20, 0
      %p92 = por %p90, %p91
      %p93 = scmp.ne.s32.totalorder %s82, %s85
      %p94 = scmp.eq.s32.totalorder %s25, 1
      %p95 = por %p93, %p94
      %p96 = scmp.ne.s32.totalorder %s85, %s86
      %p97 = scmp.eq.s32.totalorder %s25, 0
      %p98 = por %p96, %p97
      %p99 = scmp.ne.s32.totalorder %s85, %s86
      %p100 = scmp.eq.s32.totalorder %s26, 1
      %p101 = por %p99, %p100
      %p103 = scmp.ne.s32.totalorder %s86, %s102
      %p104 = scmp.eq.s32.totalorder %s26, 0
      %p105 = por %p103, %p104
      %s107 = sadd.s32 %s106, 1
      %p110 = scmp.eq.s32.totalorder %s20, 1
      %p111 = scmp.ne.s32.totalorder %s106, %s108
      %p112 = scmp.eq.s32.totalorder %s20, 0
      %p113 = por %p111, %p112
      %p114 = scmp.ne.s32.totalorder %s106, %s108
      %p115 = scmp.eq.s32.totalorder %s25, 1
      %p116 = por %p114, %p115
      %p117 = scmp.ne.s32.totalorder %s108, %s109
      %p118 = scmp.eq.s32.totalorder %s25, 0
      %p119 = por %p117, %p118
      %p120 = scmp.ne.s32.totalorder %s108, %s109
      %p121 = scmp.eq.s32.totalorder %s26, 1
      %p122 = por %p120, %p121
      %p124 = scmp.ne.s32.totalorder %s109, %s123
      %p125 = scmp.eq.s32.totalorder %s26, 0
      %p126 = por %p124, %p125
      %s128 = sadd.s32 %s127, 1
      %p131 = scmp.eq.s32.totalorder %s20, 1
      %p132 = scmp.ne.s32.totalorder %s127, %s129
      %p133 = scmp.eq.s32.totalorder %s20, 0
      %p134 = por %p132, %p133
      %p135 = scmp.ne.s32.totalorder %s127, %s129
      %p136 = scmp.eq.s32.totalorder %s25, 1
      %p137 = por %p135, %p136
      %p138 = scmp.ne.s32.totalorder %s129, %s130
      %p139 = scmp.eq.s32.totalorder %s25, 0
      %p140 = por %p138, %p139
      %p141 = scmp.ne.s32.totalorder %s129, %s130
      %p142 = scmp.eq.s32.totalorder %s26, 1
      %p143 = por %p141, %p142
      %p145 = scmp.ne.s32.totalorder %s130, %s144
      %p146 = scmp.eq.s32.totalorder %s26, 0
      %p147 = por %p145, %p146
      %s148 = ssub.s32 %s20, %s27
      %p149 = scmp.eq.s32.totalorder %s148, 0
      %s151 = sadd.s32 %s150, 1
      %s152 = scalar_select %p149, %s150, %s151
      %p155 = pneg %p149
      %p156 = scmp.eq.s32.totalorder %s20, 1
      %p157 = por %p155, %p156
      %p158 = scmp.ne.s32.totalorder %s150, %s153
      %p159 = scmp.eq.s32.totalorder %s20, 0
      %p160 = por %p158, %p159
      %p161 = scmp.ne.s32.totalorder %s150, %s153
      %p162 = scmp.eq.s32.totalorder %s25, 1
      %p163 = por %p161, %p162
      %p164 = scmp.ne.s32.totalorder %s153, %s154
      %p165 = scmp.eq.s32.totalorder %s25, 0
      %p166 = por %p164, %p165
      %p167 = scmp.ne.s32.totalorder %s153, %s154
      %p168 = scmp.eq.s32.totalorder %s26, 1
      %p169 = por %p167, %p168
      %p171 = scmp.ne.s32.totalorder %s154, %s170
      %p172 = scmp.eq.s32.totalorder %s26, 0
      %p173 = por %p171, %p172
      %s174 = ssub.s32 %s20, %s27
      %p175 = scmp.eq.s32.totalorder %s174, 0
      %s177 = sadd.s32 %s176, 1
      %s178 = scalar_select %p175, %s176, %s177
      %p181 = pneg %p175
      %p182 = scmp.eq.s32.totalorder %s20, 1
      %p183 = por %p181, %p182
      %p184 = scmp.ne.s32.totalorder %s176, %s179
      %p185 = scmp.eq.s32.totalorder %s20, 0
      %p186 = por %p184, %p185
      %p187 = scmp.ne.s32.totalorder %s176, %s179
      %p188 = scmp.eq.s32.totalorder %s25, 1
      %p189 = por %p187, %p188
      %p190 = scmp.ne.s32.totalorder %s179, %s180
      %p191 = scmp.eq.s32.totalorder %s25, 0
      %p192 = por %p190, %p191
      %p193 = scmp.ne.s32.totalorder %s179, %s180
      %p194 = scmp.eq.s32.totalorder %s26, 1
      %p195 = por %p193, %p194
      %p197 = scmp.ne.s32.totalorder %s180, %s196
      %p198 = scmp.eq.s32.totalorder %s26, 0
      %p199 = por %p197, %p198
      %p200 = scmp.le.s32.totalorder 1, %s20
      %p201 = scmp.lt.s32.totalorder %s20, 3
      %p202 = pnand %p200, %p201
      %p203 = pneg %p202
      // Predicated region
      $region9: #{tpu_custom_call.1} parent=5 // pred_check
        _
      $region10: #{tpu_custom_call.1} parent=5 // pred_check_branch
        %205 = sbr.rel (%p202) target = $region12
      $region11: #{tpu_custom_call.1} parent=5 // pred_region
        %s206 = ssub.s32 %s20, 1
        // Predicated region
        $region13: #{tpu_custom_call.1} parent=11 // pred_check
          %p207 = pneg %p119
        $region14: #{tpu_custom_call.1} parent=11 // pred_check_branch
          %209 = sbr.rel (%p207) target = $region16
        $region15: #{tpu_custom_call.1} parent=11 // pred_region
          %s211 = ssub.s32 6144, 6144
          %212 = vsyncadd [#allocation3], %s211
          %s213 = sshll.u32 [#allocation2], 4
          %s214 = int_to_ptr.vmem [resolvable:$true] %s213
          %219 = dma.hbm_to_vmem [thread:$0]  %s3, 6144, %s214, [#allocation3], 64, 64, 4
        $region16: #{tpu_custom_call.1} parent=11 // pred_fallthru
          _
        // Predicated region
        $region17: #{tpu_custom_call.1} parent=11 // pred_check
          %p220 = pneg %p140
        $region18: #{tpu_custom_call.1} parent=11 // pred_check_branch
          %222 = sbr.rel (%p220) target = $region20
        $region19: #{tpu_custom_call.1} parent=11 // pred_region
          _
        $region20: #{tpu_custom_call.1} parent=11 // pred_fallthru
          _
      $region12: #{tpu_custom_call.1} parent=5 // pred_fallthru
        _
      %p223 = scmp.lt.s32.totalorder %s20, 2
      // Predicated region
      $region21: #{tpu_custom_call.1} parent=5 // pred_check
        %p224 = pneg %p223
      $region22: #{tpu_custom_call.1} parent=5 // pred_check_branch
        %226 = sbr.rel (%p224) target = $region24
      $region23: #{tpu_custom_call.1} parent=5 // pred_region
        // Predicated region
        $region25: #{tpu_custom_call.1} parent=23 // pred_check
          %p227 = pneg %p40
        $region26: #{tpu_custom_call.1} parent=23 // pred_check_branch
          %229 = sbr.rel (%p227) target = $region28
        $region27: #{tpu_custom_call.1} parent=23 // pred_region
          %s230 = smul.u32 8, %s20
          %p231 = scmp.lt.s32.totalorder %s230, 15
          %s232 = scalar_select %p231, %s230, 15
          %s233 = smul.addr %s232, 2
          %s234 = smul.addr %s233, 4
          %s235 = scalar_lea.vmem %s0, %s234
          %s236 = smul.u32 8, %s20
        $region28: #{tpu_custom_call.1} parent=23 // pred_fallthru
          _
        // Predicated region
        $region29: #{tpu_custom_call.1} parent=23 // pred_check
          %p237 = pneg %p66
        $region30: #{tpu_custom_call.1} parent=23 // pred_check_branch
          %239 = sbr.rel (%p237) target = $region32
        $region31: #{tpu_custom_call.1} parent=23 // pred_region
          %s240 = smul.u32 8, %s20
          %p241 = scmp.lt.s32.totalorder %s240, 15
          %s242 = scalar_select %p241, %s240, 15
          %s243 = smul.addr %s242, 2
          %s244 = smul.addr %s243, 4
          %s245 = scalar_lea.vmem %s1, %s244
          %s246 = smul.u32 8, %s20
        $region32: #{tpu_custom_call.1} parent=23 // pred_fallthru
          _
        // Predicated region
        $region33: #{tpu_custom_call.1} parent=23 // pred_check
          %p247 = pneg %p92
        $region34: #{tpu_custom_call.1} parent=23 // pred_check_branch
          %249 = sbr.rel (%p247) target = $region36
        $region35: #{tpu_custom_call.1} parent=23 // pred_region
          %s250 = smul.u32 8, %s20
          %p251 = scmp.lt.s32.totalorder %s250, 15
          %s252 = scalar_select %p251, %s250, 15
          %s253 = smul.addr %s252, 2
          %s254 = smul.addr %s253, 8
          %s255 = scalar_lea.vmem %s2, %s254
          %s256 = smul.u32 8, %s20
        $region36: #{tpu_custom_call.1} parent=23 // pred_fallthru
          _
      $region24: #{tpu_custom_call.1} parent=5 // pred_fallthru
        _
      %p257 = scmp.le.s32.totalorder 1, %s20
      %p258 = scmp.lt.s32.totalorder %s20, 3
      %p259 = pnand %p257, %p258
      %p260 = pneg %p259
      // Predicated region
      $region37: #{tpu_custom_call.1} parent=5 // pred_check
        _
      $region38: #{tpu_custom_call.1} parent=5 // pred_check_branch
        %262 = sbr.rel (%p259) target = $region40
      $region39: #{tpu_custom_call.1} parent=5 // pred_region
        %s263 = ssub.s32 %s20, 1
        // Predicated region
        $region41: #{tpu_custom_call.1} parent=39 // pred_check
          %p264 = pneg %p119
        $region42: #{tpu_custom_call.1} parent=39 // pred_check_branch
          %266 = sbr.rel (%p264) target = $region44
        $region43: #{tpu_custom_call.1} parent=39 // pred_region
          %267 = dma.done [#allocation3], 6144
        $region44: #{tpu_custom_call.1} parent=39 // pred_fallthru
          _
        %s268 = smul.u32 8, %s25
        %p269 = scmp.lt.s32.totalorder %s268, 15
        %s270 = scalar_select %p269, %s268, 15
        %s271 = smul.addr %s270, 2
        %s272 = smul.addr %s271, 4
        %s273 = scalar_lea.vmem %s0, %s272
        %p274 = pneg %p46
        %p275 = pneg %p43
        %s276 = smul.u32 8, %s25
        %p277 = scmp.lt.s32.totalorder %s276, 15
        %s278 = scalar_select %p277, %s276, 15
        %s279 = smul.addr %s278, 2
        %s280 = smul.addr %s279, 4
        %s281 = scalar_lea.vmem %s1, %s280
        %p282 = pneg %p72
        %p283 = pneg %p69
        %s284 = smul.u32 8, %s25
        %p285 = scmp.lt.s32.totalorder %s284, 15
        %s286 = scalar_select %p285, %s284, 15
        %s287 = smul.addr %s286, 2
        %s288 = smul.addr %s287, 8
        %s289 = scalar_lea.vmem %s2, %s288
        %p290 = pneg %p98
        %p291 = pneg %p95
        %p292 = pneg %p119
        %p293 = pneg %p116
        %p294 = pneg %p140
        %p295 = pneg %p137
        %p296 = pneg %p166
        %p297 = pneg %p163
        %s298 = sand.u32 %s153, 1
        %s299 = scalar_lea.sflag [#allocation4], %s298
        %s300 = sand.u32 %s153, 1
        %s301 = smul.addr %s300, 8
        %s302 = scalar_lea.vmem [#allocation5], %s301
        %p303 = pneg %p192
        %p304 = pneg %p189
        %s305 = sand.u32 %s179, 1
        %s306 = scalar_lea.sflag [#allocation7], %s305
        %s307 = sand.u32 %s179, 1
        %s308 = smul.addr %s307, 8
        %s309 = scalar_lea.vmem [#allocation6], %s308
        %s310 = smul.u32 8, %s25
        %p311 = scmp.lt.s32.totalorder %s310, 15
        %s312 = scalar_select %p311, %s310, 15
        %s313 = smul.addr %s312, 2
        %s314 = smul.addr %s313, 4
        %s315 = scalar_lea.vmem %s0, %s314
        %s316 = smul.u32 8, %s25
        %s317 = smul.u32 8, %s25
        %p318 = scmp.lt.s32.totalorder %s317, 15
        %s319 = scalar_select %p318, %s317, 15
        %s320 = smul.addr %s319, 2
        %s321 = smul.addr %s320, 4
        %s322 = scalar_lea.vmem %s1, %s321
        %s323 = smul.u32 8, %s25
        %s324 = smul.u32 8, %s25
        %p325 = scmp.lt.s32.totalorder %s324, 15
        %s326 = scalar_select %p325, %s324, 15
        %s327 = smul.addr %s326, 2
        %s328 = smul.addr %s327, 8
        %s329 = scalar_lea.vmem %s2, %s328
        %s330 = smul.u32 8, %s25
        %v332 = vld [vmem:[%s315] sm:$0xf]
        %v333 = vld [vmem:[%s315 + $0x4] sm:$0xf]
        %v334 = vld [vmem:[%s315 + $0x8] sm:$0xf]
        %v335 = vld [vmem:[%s315 + $0xc] sm:$0xf]
        %v336 = vld [vmem:[%s315 + $0x10] sm:$0xf]
        %v337 = vld [vmem:[%s315 + $0x14] sm:$0xf]
        %v338 = vld [vmem:[%s315 + $0x18] sm:$0xf]
        %v339 = vld [vmem:[%s315 + $0x1c] sm:$0xf]
        %v340 = vld [vmem:[%s315 + $0x20] sm:$0xf]
        %v341 = vld [vmem:[%s315 + $0x24] sm:$0xf]
        %v342 = vld [vmem:[%s315 + $0x28] sm:$0xf]
        %v343 = vld [vmem:[%s315 + $0x2c] sm:$0xf]
        %v344 = vld [vmem:[%s315 + $0x30] sm:$0xf]
        %v345 = vld [vmem:[%s315 + $0x34] sm:$0xf]
        %v346 = vld [vmem:[%s315 + $0x38] sm:$0xf]
        %v347 = vld [vmem:[%s315 + $0x3c] sm:$0xf]
        %v348 = vld [vmem:[%s322] sm:$0xf]
        %v349 = vld [vmem:[%s322 + $0x4] sm:$0xf]
        %v350 = vld [vmem:[%s322 + $0x8] sm:$0xf]
        %v351 = vld [vmem:[%s322 + $0xc] sm:$0xf]
        %v352 = vld [vmem:[%s322 + $0x10] sm:$0xf]
        %v353 = vld [vmem:[%s322 + $0x14] sm:$0xf]
        %v354 = vld [vmem:[%s322 + $0x18] sm:$0xf]
        %v355 = vld [vmem:[%s322 + $0x1c] sm:$0xf]
        %v356 = vld [vmem:[%s322 + $0x20] sm:$0xf]
        %v357 = vld [vmem:[%s322 + $0x24] sm:$0xf]
        %v358 = vld [vmem:[%s322 + $0x28] sm:$0xf]
        %v359 = vld [vmem:[%s322 + $0x2c] sm:$0xf]
        %v360 = vld [vmem:[%s322 + $0x30] sm:$0xf]
        %v361 = vld [vmem:[%s322 + $0x34] sm:$0xf]
        %v362 = vld [vmem:[%s322 + $0x38] sm:$0xf]
        %v363 = vld [vmem:[%s322 + $0x3c] sm:$0xf]
        %v364 = vld [vmem:[%s329] sm:$0xff]
        %v365 = vld [vmem:[%s329 + $0x8] sm:$0xff]
        %v366 = vld [vmem:[%s329 + $0x10] sm:$0xff]
        %v367 = vld [vmem:[%s329 + $0x18] sm:$0xff]
        %v368 = vld [vmem:[%s329 + $0x20] sm:$0xff]
        %v369 = vld [vmem:[%s329 + $0x28] sm:$0xff]
        %v370 = vld [vmem:[%s329 + $0x30] sm:$0xff]
        %v371 = vld [vmem:[%s329 + $0x38] sm:$0xff]
        %v372 = vld [vmem:[%s329 + $0x40] sm:$0xff]
        %v373 = vld [vmem:[%s329 + $0x48] sm:$0xff]
        %v374 = vld [vmem:[%s329 + $0x50] sm:$0xff]
        %v375 = vld [vmem:[%s329 + $0x58] sm:$0xff]
        %v376 = vld [vmem:[%s329 + $0x60] sm:$0xff]
        %v377 = vld [vmem:[%s329 + $0x68] sm:$0xff]
        %v378 = vld [vmem:[%s329 + $0x70] sm:$0xff]
        %v379 = vld [vmem:[%s329 + $0x78] sm:$0xff]
        %v380 = vld [vmem:[#allocation2] sm:$0xf]
        %v381 = vld [vmem:[#allocation2 + $0x4] sm:$0xf]
        %v382 = vld [vmem:[#allocation2 + $0x8] sm:$0xf]
        %v383 = vld [vmem:[#allocation2 + $0xc] sm:$0xf]
        %v384 = vld [vmem:[#allocation2 + $0x10] sm:$0xf]
        %v385 = vld [vmem:[#allocation2 + $0x14] sm:$0xf]
        %v386 = vld [vmem:[#allocation2 + $0x18] sm:$0xf]
        %v387 = vld [vmem:[#allocation2 + $0x1c] sm:$0xf]
        %v388 = vld [vmem:[#allocation2 + $0x20] sm:$0xf]
        %v389 = vld [vmem:[#allocation2 + $0x24] sm:$0xf]
        %v390 = vld [vmem:[#allocation2 + $0x28] sm:$0xf]
        %v391 = vld [vmem:[#allocation2 + $0x2c] sm:$0xf]
        %v392 = vld [vmem:[#allocation2 + $0x30] sm:$0xf]
        %v393 = vld [vmem:[#allocation2 + $0x34] sm:$0xf]
        %v394 = vld [vmem:[#allocation2 + $0x38] sm:$0xf]
        %v395 = vld [vmem:[#allocation2 + $0x3c] sm:$0xf]
        %v396 = vld [vmem:[%s4] sm:$0x1]
        %v399 = vunpack.c.l.b16 %v332
        %v400 = vunpack.c.l.b16 %v333
        %v401 = vpack.c.b16 %v400, %v399
        %v404 = vunpack.c.l.b16 %v348
        %v405 = vunpack.c.l.b16 %v349
        %v406 = vpack.c.b16 %v405, %v404
        %vm408 = vcmask 130048
        %v410 = vsel %vm408, %v401, 0
        %412 = vmatprep.subr.bf16.mxu0 0
        %413 = vmatpush1.bf16.msra.mxu0 %v406
        %414 = vmatprep.subr.bf16.mxu0 0
        %415 = vmatpush1.bf16.msra.mxu0 0
        %416 = vmatprep.subr.bf16.mxu0 0
        %417 = vmatpush1.bf16.msra.mxu0 0
        %418 = vmatprep.subr.bf16.mxu0 0
        %419 = vmatpush1.bf16.msra.mxu0 0
        %420 = vmatprep.subr.bf16.mxu0 0
        %421 = vmatpush1.bf16.msra.mxu0 0
        %422 = vmatprep.subr.bf16.mxu0 0
        %423 = vmatpush1.bf16.msra.mxu0 0
        %424 = vmatprep.subr.bf16.mxu0 0
        %425 = vmatpush1.bf16.msra.mxu0 0
        %426 = vmatprep.subr.bf16.mxu0 0
        %427 = vmatpush1.bf16.msra.mxu0 0
        %428 = vmatprep.subr.bf16.mxu0 0
        %429 = vmatpush1.bf16.msra.mxu0 0
        %430 = vmatprep.subr.bf16.mxu0 0
        %431 = vmatpush1.bf16.msra.mxu0 0
        %432 = vmatprep.subr.bf16.mxu0 0
        %433 = vmatpush1.bf16.msra.mxu0 0
        %434 = vmatprep.subr.bf16.mxu0 0
        %435 = vmatpush1.bf16.msra.mxu0 0
        %436 = vmatprep.subr.bf16.mxu0 0
        %437 = vmatpush1.bf16.msra.mxu0 0
        %438 = vmatprep.subr.bf16.mxu0 0
        %439 = vmatpush1.bf16.msra.mxu0 0
        %440 = vmatprep.subr.bf16.mxu0 0
        %441 = vmatpush1.bf16.msra.mxu0 0
        %442 = vmatprep.subr.bf16.mxu0 0
        %443 = vmatpush1.bf16.msra.mxu0 0
        %444 = vmatprep.mubr.bf16.mxu0 0
        %445 = vmatmul.mubr.bf16.gmra.mrb[0].mxu0 %v410
        %v446 = vpop.f32.mrb[0].mxu0
        %v447 = vadd.f32 0.0, %v446
        %v448 = vpop.f32.mrb[0].mxu0
        %v449 = vpop.f32.mrb[0].mxu0
        %v450 = vadd.f32 0.0, %v449
        %v451 = vpop.f32.mrb[0].mxu0
        %452 = vdwg.mxu0
        %v455 = vunpack.c.l.b16 %v334
        %v456 = vunpack.c.l.b16 %v335
        %v457 = vpack.c.b16 %v456, %v455
        %v460 = vunpack.c.l.b16 %v350
        %v461 = vunpack.c.l.b16 %v351
        %v462 = vpack.c.b16 %v461, %v460
        %v465 = vsel %vm408, %v457, 0
        %467 = vmatprep.subr.bf16.mxu0 0
        %468 = vmatpush1.bf16.msra.mxu0 %v462
        %469 = vmatprep.subr.bf16.mxu0 0
        %470 = vmatpush1.bf16.msra.mxu0 0
        %471 = vmatprep.subr.bf16.mxu0 0
        %472 = vmatpush1.bf16.msra.mxu0 0
        %473 = vmatprep.subr.bf16.mxu0 0
        %474 = vmatpush1.bf16.msra.mxu0 0
        %475 = vmatprep.subr.bf16.mxu0 0
        %476 = vmatpush1.bf16.msra.mxu0 0
        %477 = vmatprep.subr.bf16.mxu0 0
        %478 = vmatpush1.bf16.msra.mxu0 0
        %479 = vmatprep.subr.bf16.mxu0 0
        %480 = vmatpush1.bf16.msra.mxu0 0
        %481 = vmatprep.subr.bf16.mxu0 0
        %482 = vmatpush1.bf16.msra.mxu0 0
        %483 = vmatprep.subr.bf16.mxu0 0
        %484 = vmatpush1.bf16.msra.mxu0 0
        %485 = vmatprep.subr.bf16.mxu0 0
        %486 = vmatpush1.bf16.msra.mxu0 0
        %487 = vmatprep.subr.bf16.mxu0 0
        %488 = vmatpush1.bf16.msra.mxu0 0
        %489 = vmatprep.subr.bf16.mxu0 0
        %490 = vmatpush1.bf16.msra.mxu0 0
        %491 = vmatprep.subr.bf16.mxu0 0
        %492 = vmatpush1.bf16.msra.mxu0 0
        %493 = vmatprep.subr.bf16.mxu0 0
        %494 = vmatpush1.bf16.msra.mxu0 0
        %495 = vmatprep.subr.bf16.mxu0 0
        %496 = vmatpush1.bf16.msra.mxu0 0
        %497 = vmatprep.subr.bf16.mxu0 0
        %498 = vmatpush1.bf16.msra.mxu0 0
        %499 = vmatprep.mubr.bf16.mxu0 0
        %500 = vmatmul.mubr.bf16.gmra.mrb[0].mxu0 %v465
        %v501 = vpop.f32.mrb[0].mxu0
        %v502 = vadd.f32 0.0, %v501
        %v503 = vpop.f32.mrb[0].mxu0
        %v504 = vpop.f32.mrb[0].mxu0
        %v505 = vadd.f32 0.0, %v504
        %v506 = vpop.f32.mrb[0].mxu0
        %507 = vdwg.mxu0
        %v510 = vunpack.c.l.b16 %v336
        %v511 = vunpack.c.l.b16 %v337
        %v512 = vpack.c.b16 %v511, %v510
        %v515 = vunpack.c.l.b16 %v352
        %v516 = vunpack.c.l.b16 %v353
        %v517 = vpack.c.b16 %v516, %v515
        %v520 = vsel %vm408, %v512, 0
        %522 = vmatprep.subr.bf16.mxu0 0
        %523 = vmatpush1.bf16.msra.mxu0 %v517
        %524 = vmatprep.subr.bf16.mxu0 0
        %525 = vmatpush1.bf16.msra.mxu0 0
        %526 = vmatprep.subr.bf16.mxu0 0
        %527 = vmatpush1.bf16.msra.mxu0 0
        %528 = vmatprep.subr.bf16.mxu0 0
        %529 = vmatpush1.bf16.msra.mxu0 0
        %530 = vmatprep.subr.bf16.mxu0 0
        %531 = vmatpush1.bf16.msra.mxu0 0
        %532 = vmatprep.subr.bf16.mxu0 0
        %533 = vmatpush1.bf16.msra.mxu0 0
        %534 = vmatprep.subr.bf16.mxu0 0
        %535 = vmatpush1.bf16.msra.mxu0 0
        %536 = vmatprep.subr.bf16.mxu0 0
        %537 = vmatpush1.bf16.msra.mxu0 0
        %538 = vmatprep.subr.bf16.mxu0 0
        %539 = vmatpush1.bf16.msra.mxu0 0
        %540 = vmatprep.subr.bf16.mxu0 0
        %541 = vmatpush1.bf16.msra.mxu0 0
        %542 = vmatprep.subr.bf16.mxu0 0
        %543 = vmatpush1.bf16.msra.mxu0 0
        %544 = vmatprep.subr.bf16.mxu0 0
        %545 = vmatpush1.bf16.msra.mxu0 0
        %546 = vmatprep.subr.bf16.mxu0 0
        %547 = vmatpush1.bf16.msra.mxu0 0
        %548 = vmatprep.subr.bf16.mxu0 0
        %549 = vmatpush1.bf16.msra.mxu0 0
        %550 = vmatprep.subr.bf16.mxu0 0
        %551 = vmatpush1.bf16.msra.mxu0 0
        %552 = vmatprep.subr.bf16.mxu0 0
        %553 = vmatpush1.bf16.msra.mxu0 0
        %554 = vmatprep.mubr.bf16.mxu0 0
        %555 = vmatmul.mubr.bf16.gmra.mrb[0].mxu0 %v520
        %v556 = vpop.f32.mrb[0].mxu0
        %v557 = vadd.f32 0.0, %v556
        %v558 = vpop.f32.mrb[0].mxu0
        %v559 = vpop.f32.mrb[0].mxu0
        %v560 = vadd.f32 0.0, %v559
        %v561 = vpop.f32.mrb[0].mxu0
        %562 = vdwg.mxu0
        %v565 = vunpack.c.l.b16 %v338
        %v566 = vunpack.c.l.b16 %v339
        %v567 = vpack.c.b16 %v566, %v565
        %v570 = vunpack.c.l.b16 %v354
        %v571 = vunpack.c.l.b16 %v355
        %v572 = vpack.c.b16 %v571, %v570
        %v575 = vsel %vm408, %v567, 0
        %577 = vmatprep.subr.bf16.mxu0 0
        %578 = vmatpush1.bf16.msra.mxu0 %v572
        %579 = vmatprep.subr.bf16.mxu0 0
        %580 = vmatpush1.bf16.msra.mxu0 0
        %581 = vmatprep.subr.bf16.mxu0 0
        %582 = vmatpush1.bf16.msra.mxu0 0
        %583 = vmatprep.subr.bf16.mxu0 0
        %584 = vmatpush1.bf16.msra.mxu0 0
        %585 = vmatprep.subr.bf16.mxu0 0
        %586 = vmatpush1.bf16.msra.mxu0 0
        %587 = vmatprep.subr.bf16.mxu0 0
        %588 = vmatpush1.bf16.msra.mxu0 0
        %589 = vmatprep.subr.bf16.mxu0 0
        %590 = vmatpush1.bf16.msra.mxu0 0
        %591 = vmatprep.subr.bf16.mxu0 0
        %592 = vmatpush1.bf16.msra.mxu0 0
        %593 = vmatprep.subr.bf16.mxu0 0
        %594 = vmatpush1.bf16.msra.mxu0 0
        %595 = vmatprep.subr.bf16.mxu0 0
        %596 = vmatpush1.bf16.msra.mxu0 0
        %597 = vmatprep.subr.bf16.mxu0 0
        %598 = vmatpush1.bf16.msra.mxu0 0
        %599 = vmatprep.subr.bf16.mxu0 0
        %600 = vmatpush1.bf16.msra.mxu0 0
        %601 = vmatprep.subr.bf16.mxu0 0
        %602 = vmatpush1.bf16.msra.mxu0 0
        %603 = vmatprep.subr.bf16.mxu0 0
        %604 = vmatpush1.bf16.msra.mxu0 0
        %605 = vmatprep.subr.bf16.mxu0 0
        %606 = vmatpush1.bf16.msra.mxu0 0
        %607 = vmatprep.subr.bf16.mxu0 0
        %608 = vmatpush1.bf16.msra.mxu0 0
        %609 = vmatprep.mubr.bf16.mxu0 0
        %610 = vmatmul.mubr.bf16.gmra.mrb[0].mxu0 %v575
        %v611 = vpop.f32.mrb[0].mxu0
        %v612 = vadd.f32 0.0, %v611
        %v613 = vpop.f32.mrb[0].mxu0
        %v614 = vpop.f32.mrb[0].mxu0
        %v615 = vadd.f32 0.0, %v614
        %v616 = vpop.f32.mrb[0].mxu0
        %617 = vdwg.mxu0
        %v620 = vunpack.c.l.b16 %v340
        %v621 = vunpack.c.l.b16 %v341
        %v622 = vpack.c.b16 %v621, %v620
        %v625 = vunpack.c.l.b16 %v356
        %v626 = vunpack.c.l.b16 %v357
        %v627 = vpack.c.b16 %v626, %v625
        %v630 = vsel %vm408, %v622, 0
        %632 = vmatprep.subr.bf16.mxu0 0
        %633 = vmatpush1.bf16.msra.mxu0 %v627
        %634 = vmatprep.subr.bf16.mxu0 0
        %635 = vmatpush1.bf16.msra.mxu0 0
        %636 = vmatprep.subr.bf16.mxu0 0
        %637 = vmatpush1.bf16.msra.mxu0 0
        %638 = vmatprep.subr.bf16.mxu0 0
        %639 = vmatpush1.bf16.msra.mxu0 0
        %640 = vmatprep.subr.bf16.mxu0 0
        %641 = vmatpush1.bf16.msra.mxu0 0
        %642 = vmatprep.subr.bf16.mxu0 0
        %643 = vmatpush1.bf16.msra.mxu0 0
        %644 = vmatprep.subr.bf16.mxu0 0
        %645 = vmatpush1.bf16.msra.mxu0 0
        %646 = vmatprep.subr.bf16.mxu0 0
        %647 = vmatpush1.bf16.msra.mxu0 0
        %648 = vmatprep.subr.bf16.mxu0 0
        %649 = vmatpush1.bf16.msra.mxu0 0
        %650 = vmatprep.subr.bf16.mxu0 0
        %651 = vmatpush1.bf16.msra.mxu0 0
        %652 = vmatprep.subr.bf16.mxu0 0
        %653 = vmatpush1.bf16.msra.mxu0 0
        %654 = vmatprep.subr.bf16.mxu0 0
        %655 = vmatpush1.bf16.msra.mxu0 0
        %656 = vmatprep.subr.bf16.mxu0 0
        %657 = vmatpush1.bf16.msra.mxu0 0
        %658 = vmatprep.subr.bf16.mxu0 0
        %659 = vmatpush1.bf16.msra.mxu0 0
        %660 = vmatprep.subr.bf16.mxu0 0
        %661 = vmatpush1.bf16.msra.mxu0 0
        %662 = vmatprep.subr.bf16.mxu0 0
        %663 = vmatpush1.bf16.msra.mxu0 0
        %664 = vmatprep.mubr.bf16.mxu0 0
        %665 = vmatmul.mubr.bf16.gmra.mrb[0].mxu0 %v630
        %v666 = vpop.f32.mrb[0].mxu0
        %v667 = vadd.f32 0.0, %v666
        %v668 = vpop.f32.mrb[0].mxu0
        %v669 = vpop.f32.mrb[0].mxu0
        %v670 = vadd.f32 0.0, %v669
        %v671 = vpop.f32.mrb[0].mxu0
        %672 = vdwg.mxu0
        %v675 = vunpack.c.l.b16 %v342
        %v676 = vunpack.c.l.b16 %v343
        %v677 = vpack.c.b16 %v676, %v675
        %v680 = vunpack.c.l.b16 %v358
        %v681 = vunpack.c.l.b16 %v359
        %v682 = vpack.c.b16 %v681, %v680
        %v685 = vsel %vm408, %v677, 0
        %687 = vmatprep.subr.bf16.mxu0 0
        %688 = vmatpush1.bf16.msra.mxu0 %v682
        %689 = vmatprep.subr.bf16.mxu0 0
        %690 = vmatpush1.bf16.msra.mxu0 0
        %691 = vmatprep.subr.bf16.mxu0 0
        %692 = vmatpush1.bf16.msra.mxu0 0
        %693 = vmatprep.subr.bf16.mxu0 0
        %694 = vmatpush1.bf16.msra.mxu0 0
        %695 = vmatprep.subr.bf16.mxu0 0
        %696 = vmatpush1.bf16.msra.mxu0 0
        %697 = vmatprep.subr.bf16.mxu0 0
        %698 = vmatpush1.bf16.msra.mxu0 0
        %699 = vmatprep.subr.bf16.mxu0 0
        %700 = vmatpush1.bf16.msra.mxu0 0
        %701 = vmatprep.subr.bf16.mxu0 0
        %702 = vmatpush1.bf16.msra.mxu0 0
        %703 = vmatprep.subr.bf16.mxu0 0
        %704 = vmatpush1.bf16.msra.mxu0 0
        %705 = vmatprep.subr.bf16.mxu0 0
        %706 = vmatpush1.bf16.msra.mxu0 0
        %707 = vmatprep.subr.bf16.mxu0 0
        %708 = vmatpush1.bf16.msra.mxu0 0
        %709 = vmatprep.subr.bf16.mxu0 0
        %710 = vmatpush1.bf16.msra.mxu0 0
        %711 = vmatprep.subr.bf16.mxu0 0
        %712 = vmatpush1.bf16.msra.mxu0 0
        %713 = vmatprep.subr.bf16.mxu0 0
        %714 = vmatpush1.bf16.msra.mxu0 0
        %715 = vmatprep.subr.bf16.mxu0 0
        %716 = vmatpush1.bf16.msra.mxu0 0
        %717 = vmatprep.subr.bf16.mxu0 0
        %718 = vmatpush1.bf16.msra.mxu0 0
        %719 = vmatprep.mubr.bf16.mxu0 0
        %720 = vmatmul.mubr.bf16.gmra.mrb[0].mxu0 %v685
        %v721 = vpop.f32.mrb[0].mxu0
        %v722 = vadd.f32 0.0, %v721
        %v723 = vpop.f32.mrb[0].mxu0
        %v724 = vpop.f32.mrb[0].mxu0
        %v725 = vadd.f32 0.0, %v724
        %v726 = vpop.f32.mrb[0].mxu0
        %727 = vdwg.mxu0
        %v730 = vunpack.c.l.b16 %v344
        %v731 = vunpack.c.l.b16 %v345
        %v732 = vpack.c.b16 %v731, %v730
        %v735 = vunpack.c.l.b16 %v360
        %v736 = vunpack.c.l.b16 %v361
        %v737 = vpack.c.b16 %v736, %v735
        %v740 = vsel %vm408, %v732, 0
        %742 = vmatprep.subr.bf16.mxu0 0
        %743 = vmatpush1.bf16.msra.mxu0 %v737
        %744 = vmatprep.subr.bf16.mxu0 0
        %745 = vmatpush1.bf16.msra.mxu0 0
        %746 = vmatprep.subr.bf16.mxu0 0
        %747 = vmatpush1.bf16.msra.mxu0 0
        %748 = vmatprep.subr.bf16.mxu0 0
        %749 = vmatpush1.bf16.msra.mxu0 0
        %750 = vmatprep.subr.bf16.mxu0 0
        %751 = vmatpush1.bf16.msra.mxu0 0
        %752 = vmatprep.subr.bf16.mxu0 0
        %753 = vmatpush1.bf16.msra.mxu0 0
        %754 = vmatprep.subr.bf16.mxu0 0
        %755 = vmatpush1.bf16.msra.mxu0 0
        %756 = vmatprep.subr.bf16.mxu0 0
        %757 = vmatpush1.bf16.msra.mxu0 0
        %758 = vmatprep.subr.bf16.mxu0 0
        %759 = vmatpush1.bf16.msra.mxu0 0
        %760 = vmatprep.subr.bf16.mxu0 0
        %761 = vmatpush1.bf16.msra.mxu0 0
        %762 = vmatprep.subr.bf16.mxu0 0
        %763 = vmatpush1.bf16.msra.mxu0 0
        %764 = vmatprep.subr.bf16.mxu0 0
        %765 = vmatpush1.bf16.msra.mxu0 0
        %766 = vmatprep.subr.bf16.mxu0 0
        %767 = vmatpush1.bf16.msra.mxu0 0
        %768 = vmatprep.subr.bf16.mxu0 0
        %769 = vmatpush1.bf16.msra.mxu0 0
        %770 = vmatprep.subr.bf16.mxu0 0
        %771 = vmatpush1.bf16.msra.mxu0 0
        %772 = vmatprep.subr.bf16.mxu0 0
        %773 = vmatpush1.bf16.msra.mxu0 0
        %774 = vmatprep.mubr.bf16.mxu0 0
        %775 = vmatmul.mubr.bf16.gmra.mrb[0].mxu0 %v740
        %v776 = vpop.f32.mrb[0].mxu0
        %v777 = vadd.f32 0.0, %v776
        %v778 = vpop.f32.mrb[0].mxu0
        %v779 = vpop.f32.mrb[0].mxu0
        %v780 = vadd.f32 0.0, %v779
        %v781 = vpop.f32.mrb[0].mxu0
        %782 = vdwg.mxu0
        %v785 = vunpack.c.l.b16 %v346
        %v786 = vunpack.c.l.b16 %v347
        %v787 = vpack.c.b16 %v786, %v785
        %v790 = vunpack.c.l.b16 %v362
        %v791 = vunpack.c.l.b16 %v363
        %v792 = vpack.c.b16 %v791, %v790
        %v795 = vsel %vm408, %v787, 0
        %797 = vmatprep.subr.bf16.mxu0 0
        %798 = vmatpush1.bf16.msra.mxu0 %v792
        %799 = vmatprep.subr.bf16.mxu0 0
        %800 = vmatpush1.bf16.msra.mxu0 0
        %801 = vmatprep.subr.bf16.mxu0 0
        %802 = vmatpush1.bf16.msra.mxu0 0
        %803 = vmatprep.subr.bf16.mxu0 0
        %804 = vmatpush1.bf16.msra.mxu0 0
        %805 = vmatprep.subr.bf16.mxu0 0
        %806 = vmatpush1.bf16.msra.mxu0 0
        %807 = vmatprep.subr.bf16.mxu0 0
        %808 = vmatpush1.bf16.msra.mxu0 0
        %809 = vmatprep.subr.bf16.mxu0 0
        %810 = vmatpush1.bf16.msra.mxu0 0
        %811 = vmatprep.subr.bf16.mxu0 0
        %812 = vmatpush1.bf16.msra.mxu0 0
        %813 = vmatprep.subr.bf16.mxu0 0
        %814 = vmatpush1.bf16.msra.mxu0 0
        %815 = vmatprep.subr.bf16.mxu0 0
        %816 = vmatpush1.bf16.msra.mxu0 0
        %817 = vmatprep.subr.bf16.mxu0 0
        %818 = vmatpush1.bf16.msra.mxu0 0
        %819 = vmatprep.subr.bf16.mxu0 0
        %820 = vmatpush1.bf16.msra.mxu0 0
        %821 = vmatprep.subr.bf16.mxu0 0
        %822 = vmatpush1.bf16.msra.mxu0 0
        %823 = vmatprep.subr.bf16.mxu0 0
        %824 = vmatpush1.bf16.msra.mxu0 0
        %825 = vmatprep.subr.bf16.mxu0 0
        %826 = vmatpush1.bf16.msra.mxu0 0
        %827 = vmatprep.subr.bf16.mxu0 0
        %828 = vmatpush1.bf16.msra.mxu0 0
        %829 = vmatprep.mubr.bf16.mxu0 0
        %830 = vmatmul.mubr.bf16.gmra.mrb[0].mxu0 %v795
        %v831 = vpop.f32.mrb[0].mxu0
        %v832 = vadd.f32 0.0, %v831
        %v833 = vpop.f32.mrb[0].mxu0
        %v834 = vpop.f32.mrb[0].mxu0
        %v835 = vadd.f32 0.0, %v834
        %v836 = vpop.f32.mrb[0].mxu0
        %837 = vdwg.mxu0
        %v838 = vpack.c.bf16 %v450, %v447
        %v839 = vpack.c.bf16 %v505, %v502
        %v840 = vpack.c.bf16 %v560, %v557
        %v841 = vpack.c.bf16 %v615, %v612
        %v842 = vpack.c.bf16 %v670, %v667
        %v843 = vpack.c.bf16 %v725, %v722
        %v844 = vpack.c.bf16 %v780, %v777
        %v845 = vpack.c.bf16 %v835, %v832
        %v862 = vunpack.c.l.b16 %v380
        %v863 = vunpack.c.l.b16 %v381
        %v864 = vunpack.c.l.b16 %v382
        %v865 = vunpack.c.l.b16 %v383
        %v866 = vunpack.c.l.b16 %v384
        %v867 = vunpack.c.l.b16 %v385
        %v868 = vunpack.c.l.b16 %v386
        %v869 = vunpack.c.l.b16 %v387
        %v870 = vunpack.c.l.b16 %v388
        %v871 = vunpack.c.l.b16 %v389
        %v872 = vunpack.c.l.b16 %v390
        %v873 = vunpack.c.l.b16 %v391
        %v874 = vunpack.c.l.b16 %v392
        %v875 = vunpack.c.l.b16 %v393
        %v876 = vunpack.c.l.b16 %v394
        %v877 = vunpack.c.l.b16 %v395
        %v878 = vpack.c.b16 %v863, %v862
        %v879 = vpack.c.b16 %v865, %v864
        %v880 = vpack.c.b16 %v867, %v866
        %v881 = vpack.c.b16 %v869, %v868
        %v882 = vpack.c.b16 %v871, %v870
        %v883 = vpack.c.b16 %v873, %v872
        %v884 = vpack.c.b16 %v875, %v874
        %v885 = vpack.c.b16 %v877, %v876
        %894 = vmatprep.subr.bf16.mxu0 0
        %895 = vmatpush1.bf16.msra.mxu0 %v878
        %896 = vmatprep.subr.bf16.mxu0 0
        %897 = vmatpush1.bf16.msra.mxu0 %v879
        %898 = vmatprep.subr.bf16.mxu0 0
        %899 = vmatpush1.bf16.msra.mxu0 %v880
        %900 = vmatprep.subr.bf16.mxu0 0
        %901 = vmatpush1.bf16.msra.mxu0 %v881
        %902 = vmatprep.subr.bf16.mxu0 0
        %903 = vmatpush1.bf16.msra.mxu0 %v882
        %904 = vmatprep.subr.bf16.mxu0 0
        %905 = vmatpush1.bf16.msra.mxu0 %v883
        %906 = vmatprep.subr.bf16.mxu0 0
        %907 = vmatpush1.bf16.msra.mxu0 %v884
        %908 = vmatprep.subr.bf16.mxu0 0
        %909 = vmatpush1.bf16.msra.mxu0 %v885
        %910 = vmatprep.subr.bf16.mxu0 0
        %911 = vmatpush1.bf16.msra.mxu0 0
        %912 = vmatprep.subr.bf16.mxu0 0
        %913 = vmatpush1.bf16.msra.mxu0 0
        %914 = vmatprep.subr.bf16.mxu0 0
        %915 = vmatpush1.bf16.msra.mxu0 0
        %916 = vmatprep.subr.bf16.mxu0 0
        %917 = vmatpush1.bf16.msra.mxu0 0
        %918 = vmatprep.subr.bf16.mxu0 0
        %919 = vmatpush1.bf16.msra.mxu0 0
        %920 = vmatprep.subr.bf16.mxu0 0
        %921 = vmatpush1.bf16.msra.mxu0 0
        %922 = vmatprep.subr.bf16.mxu0 0
        %923 = vmatpush1.bf16.msra.mxu0 0
        %924 = vmatprep.subr.bf16.mxu0 0
        %925 = vmatpush1.bf16.msra.mxu0 0
        %926 = vmatprep.mubr.bf16.mxu0 0
        %927 = vmatmul.mubr.bf16.gmra.mrb[0].mxu0 %v838
        %v928 = vpop.f32.mrb[0].mxu0
        %v929 = vadd.f32 0.0, %v928
        %v930 = vpop.f32.mrb[0].mxu0
        %v931 = vpop.f32.mrb[0].mxu0
        %v932 = vadd.f32 0.0, %v931
        %v933 = vpop.f32.mrb[0].mxu0
        %934 = vmatprep.mubr.bf16.mxu0 0
        %935 = vmatmul.mubr.bf16.gmra.mrb[0].mxu0 %v839
        %v936 = vpop.f32.mrb[0].mxu0
        %v937 = vadd.f32 0.0, %v936
        %v938 = vpop.f32.mrb[0].mxu0
        %v939 = vpop.f32.mrb[0].mxu0
        %v940 = vadd.f32 0.0, %v939
        %v941 = vpop.f32.mrb[0].mxu0
        %942 = vmatprep.mubr.bf16.mxu0 0
        %943 = vmatmul.mubr.bf16.gmra.mrb[0].mxu0 %v840
        %v944 = vpop.f32.mrb[0].mxu0
        %v945 = vadd.f32 0.0, %v944
        %v946 = vpop.f32.mrb[0].mxu0
        %v947 = vpop.f32.mrb[0].mxu0
        %v948 = vadd.f32 0.0, %v947
        %v949 = vpop.f32.mrb[0].mxu0
        %950 = vmatprep.mubr.bf16.mxu0 0
        %951 = vmatmul.mubr.bf16.gmra.mrb[0].mxu0 %v841
        %v952 = vpop.f32.mrb[0].mxu0
        %v953 = vadd.f32 0.0, %v952
        %v954 = vpop.f32.mrb[0].mxu0
        %v955 = vpop.f32.mrb[0].mxu0
        %v956 = vadd.f32 0.0, %v955
        %v957 = vpop.f32.mrb[0].mxu0
        %958 = vmatprep.mubr.bf16.mxu0 0
        %959 = vmatmul.mubr.bf16.gmra.mrb[0].mxu0 %v842
        %v960 = vpop.f32.mrb[0].mxu0
        %v961 = vadd.f32 0.0, %v960
        %v962 = vpop.f32.mrb[0].mxu0
        %v963 = vpop.f32.mrb[0].mxu0
        %v964 = vadd.f32 0.0, %v963
        %v965 = vpop.f32.mrb[0].mxu0
        %966 = vmatprep.mubr.bf16.mxu0 0
        %967 = vmatmul.mubr.bf16.gmra.mrb[0].mxu0 %v843
        %v968 = vpop.f32.mrb[0].mxu0
        %v969 = vadd.f32 0.0, %v968
        %v970 = vpop.f32.mrb[0].mxu0
        %v971 = vpop.f32.mrb[0].mxu0
        %v972 = vadd.f32 0.0, %v971
        %v973 = vpop.f32.mrb[0].mxu0
        %974 = vmatprep.mubr.bf16.mxu0 0
        %975 = vmatmul.mubr.bf16.gmra.mrb[0].mxu0 %v844
        %v976 = vpop.f32.mrb[0].mxu0
        %v977 = vadd.f32 0.0, %v976
        %v978 = vpop.f32.mrb[0].mxu0
        %v979 = vpop.f32.mrb[0].mxu0
        %v980 = vadd.f32 0.0, %v979
        %v981 = vpop.f32.mrb[0].mxu0
        %982 = vmatprep.mubr.bf16.mxu0 0
        %983 = vmatmul.mubr.bf16.gmra.mrb[0].mxu0 %v845
        %v984 = vpop.f32.mrb[0].mxu0
        %v985 = vadd.f32 0.0, %v984
        %v986 = vpop.f32.mrb[0].mxu0
        %v987 = vpop.f32.mrb[0].mxu0
        %v988 = vadd.f32 0.0, %v987
        %v989 = vpop.f32.mrb[0].mxu0
        %990 = vdwg.mxu0
        %v991 = vlaneseq
        %v992 = vshrl.u32 %v991, 7
        %v993 = vsub.s32 0, %v992
        %v994 = vrot.slane %v396, %v993
        %996 = vset.pattern.permute.xlu0 0
        %997 = vperm.xlu0 %996, %v364
        %v998 = vpop.permute.xlu0 %997
        %1001 = vset.pattern.permute.xlu0 0
        %1002 = vperm.xlu0 %1001, %v365
        %v1003 = vpop.permute.xlu0 %1002
        %1006 = vset.pattern.permute.xlu0 0
        %1007 = vperm.xlu0 %1006, %v366
        %v1008 = vpop.permute.xlu0 %1007
        %1011 = vset.pattern.permute.xlu0 0
        %1012 = vperm.xlu0 %1011, %v367
        %v1013 = vpop.permute.xlu0 %1012
        %1016 = vset.pattern.permute.xlu0 0
        %1017 = vperm.xlu0 %1016, %v368
        %v1018 = vpop.permute.xlu0 %1017
        %1021 = vset.pattern.permute.xlu0 0
        %1022 = vperm.xlu0 %1021, %v369
        %v1023 = vpop.permute.xlu0 %1022
        %1026 = vset.pattern.permute.xlu0 0
        %1027 = vperm.xlu0 %1026, %v370
        %v1028 = vpop.permute.xlu0 %1027
        %1031 = vset.pattern.permute.xlu0 0
        %1032 = vperm.xlu0 %1031, %v371
        %v1033 = vpop.permute.xlu0 %1032
        %1036 = vset.pattern.permute.xlu0 0
        %1037 = vperm.xlu0 %1036, %v372
        %v1038 = vpop.permute.xlu0 %1037
        %1041 = vset.pattern.permute.xlu0 0
        %1042 = vperm.xlu0 %1041, %v373
        %v1043 = vpop.permute.xlu0 %1042
        %1046 = vset.pattern.permute.xlu0 0
        %1047 = vperm.xlu0 %1046, %v374
        %v1048 = vpop.permute.xlu0 %1047
        %1051 = vset.pattern.permute.xlu0 0
        %1052 = vperm.xlu0 %1051, %v375
        %v1053 = vpop.permute.xlu0 %1052
        %1056 = vset.pattern.permute.xlu0 0
        %1057 = vperm.xlu0 %1056, %v376
        %v1058 = vpop.permute.xlu0 %1057
        %1061 = vset.pattern.permute.xlu0 0
        %1062 = vperm.xlu0 %1061, %v377
        %v1063 = vpop.permute.xlu0 %1062
        %1066 = vset.pattern.permute.xlu0 0
        %1067 = vperm.xlu0 %1066, %v378
        %v1068 = vpop.permute.xlu0 %1067
        %1071 = vset.pattern.permute.xlu0 0
        %1072 = vperm.xlu0 %1071, %v379
        %v1073 = vpop.permute.xlu0 %1072
        %v1075 = vmul.f32 %v994, %v998
        %v1076 = vmul.f32 %v994, %v1003
        %v1077 = vmul.f32 %v994, %v1008
        %v1078 = vmul.f32 %v994, %v1013
        %v1079 = vmul.f32 %v994, %v1018
        %v1080 = vmul.f32 %v994, %v1023
        %v1081 = vmul.f32 %v994, %v1028
        %v1082 = vmul.f32 %v994, %v1033
        %v1083 = vmul.f32 %v994, %v1038
        %v1084 = vmul.f32 %v994, %v1043
        %v1085 = vmul.f32 %v994, %v1048
        %v1086 = vmul.f32 %v994, %v1053
        %v1087 = vmul.f32 %v994, %v1058
        %v1088 = vmul.f32 %v994, %v1063
        %v1089 = vmul.f32 %v994, %v1068
        %v1090 = vmul.f32 %v994, %v1073
        %v1091 = vadd.f32 %v929, %v1075
        %v1092 = vadd.f32 %v932, %v1076
        %v1093 = vadd.f32 %v937, %v1077
        %v1094 = vadd.f32 %v940, %v1078
        %v1095 = vadd.f32 %v945, %v1079
        %v1096 = vadd.f32 %v948, %v1080
        %v1097 = vadd.f32 %v953, %v1081
        %v1098 = vadd.f32 %v956, %v1082
        %v1099 = vadd.f32 %v961, %v1083
        %v1100 = vadd.f32 %v964, %v1084
        %v1101 = vadd.f32 %v969, %v1085
        %v1102 = vadd.f32 %v972, %v1086
        %v1103 = vadd.f32 %v977, %v1087
        %v1104 = vadd.f32 %v980, %v1088
        %v1105 = vadd.f32 %v985, %v1089
        %v1106 = vadd.f32 %v988, %v1090
        %v1107 = vmax.f32 %v1091, 0.0
        %v1108 = vmax.f32 %v1092, 0.0
        %v1109 = vmax.f32 %v1093, 0.0
        %v1110 = vmax.f32 %v1094, 0.0
        %v1111 = vmax.f32 %v1095, 0.0
        %v1112 = vmax.f32 %v1096, 0.0
        %v1113 = vmax.f32 %v1097, 0.0
        %v1114 = vmax.f32 %v1098, 0.0
        %v1115 = vmax.f32 %v1099, 0.0
        %v1116 = vmax.f32 %v1100, 0.0
        %v1117 = vmax.f32 %v1101, 0.0
        %v1118 = vmax.f32 %v1102, 0.0
        %v1119 = vmax.f32 %v1103, 0.0
        %v1120 = vmax.f32 %v1104, 0.0
        %v1121 = vmax.f32 %v1105, 0.0
        %v1122 = vmax.f32 %v1106, 0.0
        %v1123 = vpack.c.bf16 %v1108, %v1107
        %v1124 = vpack.c.bf16 %v1110, %v1109
        %v1125 = vpack.c.bf16 %v1112, %v1111
        %v1126 = vpack.c.bf16 %v1114, %v1113
        %v1127 = vpack.c.bf16 %v1116, %v1115
        %v1128 = vpack.c.bf16 %v1118, %v1117
        %v1129 = vpack.c.bf16 %v1120, %v1119
        %v1130 = vpack.c.bf16 %v1122, %v1121
        %v1131 = vld [vmem:[#allocation2 + $0x40] sm:$0xf]
        %v1132 = vld [vmem:[#allocation2 + $0x44] sm:$0xf]
        %v1133 = vld [vmem:[#allocation2 + $0x48] sm:$0xf]
        %v1134 = vld [vmem:[#allocation2 + $0x4c] sm:$0xf]
        %v1135 = vld [vmem:[#allocation2 + $0x50] sm:$0xf]
        %v1136 = vld [vmem:[#allocation2 + $0x54] sm:$0xf]
        %v1137 = vld [vmem:[#allocation2 + $0x58] sm:$0xf]
        %v1138 = vld [vmem:[#allocation2 + $0x5c] sm:$0xf]
        %v1139 = vld [vmem:[#allocation2 + $0x60] sm:$0xf]
        %v1140 = vld [vmem:[#allocation2 + $0x64] sm:$0xf]
        %v1141 = vld [vmem:[#allocation2 + $0x68] sm:$0xf]
        %v1142 = vld [vmem:[#allocation2 + $0x6c] sm:$0xf]
        %v1143 = vld [vmem:[#allocation2 + $0x70] sm:$0xf]
        %v1144 = vld [vmem:[#allocation2 + $0x74] sm:$0xf]
        %v1145 = vld [vmem:[#allocation2 + $0x78] sm:$0xf]
        %v1146 = vld [vmem:[#allocation2 + $0x7c] sm:$0xf]
        %v1147 = vld [vmem:[%s4 + $0x1] sm:$0x1]
        %1148 = vmatprep.subr.bf16.mxu0 0
        %1149 = vmatpush1.bf16.msra.mxu0 %v1123
        %1150 = vmatprep.subr.bf16.mxu0 0
        %1151 = vmatpush1.bf16.msra.mxu0 0
        %1152 = vmatprep.subr.bf16.mxu0 0
        %1153 = vmatpush1.bf16.msra.mxu0 0
        %1154 = vmatprep.subr.bf16.mxu0 0
        %1155 = vmatpush1.bf16.msra.mxu0 0
        %1156 = vmatprep.subr.bf16.mxu0 0
        %1157 = vmatpush1.bf16.msra.mxu0 0
        %1158 = vmatprep.subr.bf16.mxu0 0
        %1159 = vmatpush1.bf16.msra.mxu0 0
        %1160 = vmatprep.subr.bf16.mxu0 0
        %1161 = vmatpush1.bf16.msra.mxu0 0
        %1162 = vmatprep.subr.bf16.mxu0 0
        %1163 = vmatpush1.bf16.msra.mxu0 0
        %1164 = vmatprep.subr.bf16.mxu0 0
        %1165 = vmatpush1.bf16.msra.mxu0 0
        %1166 = vmatprep.subr.bf16.mxu0 0
        %1167 = vmatpush1.bf16.msra.mxu0 0
        %1168 = vmatprep.subr.bf16.mxu0 0
        %1169 = vmatpush1.bf16.msra.mxu0 0
        %1170 = vmatprep.subr.bf16.mxu0 0
        %1171 = vmatpush1.bf16.msra.mxu0 0
        %1172 = vmatprep.subr.bf16.mxu0 0
        %1173 = vmatpush1.bf16.msra.mxu0 0
        %1174 = vmatprep.subr.bf16.mxu0 0
        %1175 = vmatpush1.bf16.msra.mxu0 0
        %1176 = vmatprep.subr.bf16.mxu0 0
        %1177 = vmatpush1.bf16.msra.mxu0 0
        %1178 = vmatprep.subr.bf16.mxu0 0
        %1179 = vmatpush1.bf16.msra.mxu0 0
        %1180 = vmatprep.mubr.bf16.mxu0 0
        %1181 = vmatmul.mubr.bf16.gmra.mrb[0].mxu0 %v410
        %v1182 = vpop.f32.mrb[0].mxu0
        %v1183 = vadd.f32 0.0, %v1182
        %v1184 = vpop.f32.mrb[0].mxu0
        %v1185 = vpop.f32.mrb[0].mxu0
        %v1186 = vadd.f32 0.0, %v1185
        %v1187 = vpop.f32.mrb[0].mxu0
        %1188 = vdwg.mxu0
        %1189 = vmatprep.subr.bf16.mxu0 0
        %1190 = vmatpush1.bf16.msra.mxu0 %v1124
        %1191 = vmatprep.subr.bf16.mxu0 0
        %1192 = vmatpush1.bf16.msra.mxu0 0
        %1193 = vmatprep.subr.bf16.mxu0 0
        %1194 = vmatpush1.bf16.msra.mxu0 0
        %1195 = vmatprep.subr.bf16.mxu0 0
        %1196 = vmatpush1.bf16.msra.mxu0 0
        %1197 = vmatprep.subr.bf16.mxu0 0
        %1198 = vmatpush1.bf16.msra.mxu0 0
        %1199 = vmatprep.subr.bf16.mxu0 0
        %1200 = vmatpush1.bf16.msra.mxu0 0
        %1201 = vmatprep.subr.bf16.mxu0 0
        %1202 = vmatpush1.bf16.msra.mxu0 0
        %1203 = vmatprep.subr.bf16.mxu0 0
        %1204 = vmatpush1.bf16.msra.mxu0 0
        %1205 = vmatprep.subr.bf16.mxu0 0
        %1206 = vmatpush1.bf16.msra.mxu0 0
        %1207 = vmatprep.subr.bf16.mxu0 0
        %1208 = vmatpush1.bf16.msra.mxu0 0
        %1209 = vmatprep.subr.bf16.mxu0 0
        %1210 = vmatpush1.bf16.msra.mxu0 0
        %1211 = vmatprep.subr.bf16.mxu0 0
        %1212 = vmatpush1.bf16.msra.mxu0 0
        %1213 = vmatprep.subr.bf16.mxu0 0
        %1214 = vmatpush1.bf16.msra.mxu0 0
        %1215 = vmatprep.subr.bf16.mxu0 0
        %1216 = vmatpush1.bf16.msra.mxu0 0
        %1217 = vmatprep.subr.bf16.mxu0 0
        %1218 = vmatpush1.bf16.msra.mxu0 0
        %1219 = vmatprep.subr.bf16.mxu0 0
        %1220 = vmatpush1.bf16.msra.mxu0 0
        %1221 = vmatprep.mubr.bf16.mxu0 0
        %1222 = vmatmul.mubr.bf16.gmra.mrb[0].mxu0 %v465
        %v1223 = vpop.f32.mrb[0].mxu0
        %v1224 = vadd.f32 0.0, %v1223
        %v1225 = vpop.f32.mrb[0].mxu0
        %v1226 = vpop.f32.mrb[0].mxu0
        %v1227 = vadd.f32 0.0, %v1226
        %v1228 = vpop.f32.mrb[0].mxu0
        %1229 = vdwg.mxu0
        %1230 = vmatprep.subr.bf16.mxu0 0
        %1231 = vmatpush1.bf16.msra.mxu0 %v1125
        %1232 = vmatprep.subr.bf16.mxu0 0
        %1233 = vmatpush1.bf16.msra.mxu0 0
        %1234 = vmatprep.subr.bf16.mxu0 0
        %1235 = vmatpush1.bf16.msra.mxu0 0
        %1236 = vmatprep.subr.bf16.mxu0 0
        %1237 = vmatpush1.bf16.msra.mxu0 0
        %1238 = vmatprep.subr.bf16.mxu0 0
        %1239 = vmatpush1.bf16.msra.mxu0 0
        %1240 = vmatprep.subr.bf16.mxu0 0
        %1241 = vmatpush1.bf16.msra.mxu0 0
        %1242 = vmatprep.subr.bf16.mxu0 0
        %1243 = vmatpush1.bf16.msra.mxu0 0
        %1244 = vmatprep.subr.bf16.mxu0 0
        %1245 = vmatpush1.bf16.msra.mxu0 0
        %1246 = vmatprep.subr.bf16.mxu0 0
        %1247 = vmatpush1.bf16.msra.mxu0 0
        %1248 = vmatprep.subr.bf16.mxu0 0
        %1249 = vmatpush1.bf16.msra.mxu0 0
        %1250 = vmatprep.subr.bf16.mxu0 0
        %1251 = vmatpush1.bf16.msra.mxu0 0
        %1252 = vmatprep.subr.bf16.mxu0 0
        %1253 = vmatpush1.bf16.msra.mxu0 0
        %1254 = vmatprep.subr.bf16.mxu0 0
        %1255 = vmatpush1.bf16.msra.mxu0 0
        %1256 = vmatprep.subr.bf16.mxu0 0
        %1257 = vmatpush1.bf16.msra.mxu0 0
        %1258 = vmatprep.subr.bf16.mxu0 0
        %1259 = vmatpush1.bf16.msra.mxu0 0
        %1260 = vmatprep.subr.bf16.mxu0 0
        %1261 = vmatpush1.bf16.msra.mxu0 0
        %1262 = vmatprep.mubr.bf16.mxu0 0
        %1263 = vmatmul.mubr.bf16.gmra.mrb[0].mxu0 %v520
        %v1264 = vpop.f32.mrb[0].mxu0
        %v1265 = vadd.f32 0.0, %v1264
        %v1266 = vpop.f32.mrb[0].mxu0
        %v1267 = vpop.f32.mrb[0].mxu0
        %v1268 = vadd.f32 0.0, %v1267
        %v1269 = vpop.f32.mrb[0].mxu0
        %1270 = vdwg.mxu0
        %1271 = vmatprep.subr.bf16.mxu0 0
        %1272 = vmatpush1.bf16.msra.mxu0 %v1126
        %1273 = vmatprep.subr.bf16.mxu0 0
        %1274 = vmatpush1.bf16.msra.mxu0 0
        %1275 = vmatprep.subr.bf16.mxu0 0
        %1276 = vmatpush1.bf16.msra.mxu0 0
        %1277 = vmatprep.subr.bf16.mxu0 0
        %1278 = vmatpush1.bf16.msra.mxu0 0
        %1279 = vmatprep.subr.bf16.mxu0 0
        %1280 = vmatpush1.bf16.msra.mxu0 0
        %1281 = vmatprep.subr.bf16.mxu0 0
        %1282 = vmatpush1.bf16.msra.mxu0 0
        %1283 = vmatprep.subr.bf16.mxu0 0
        %1284 = vmatpush1.bf16.msra.mxu0 0
        %1285 = vmatprep.subr.bf16.mxu0 0
        %1286 = vmatpush1.bf16.msra.mxu0 0
        %1287 = vmatprep.subr.bf16.mxu0 0
        %1288 = vmatpush1.bf16.msra.mxu0 0
        %1289 = vmatprep.subr.bf16.mxu0 0
        %1290 = vmatpush1.bf16.msra.mxu0 0
        %1291 = vmatprep.subr.bf16.mxu0 0
        %1292 = vmatpush1.bf16.msra.mxu0 0
        %1293 = vmatprep.subr.bf16.mxu0 0
        %1294 = vmatpush1.bf16.msra.mxu0 0
        %1295 = vmatprep.subr.bf16.mxu0 0
        %1296 = vmatpush1.bf16.msra.mxu0 0
        %1297 = vmatprep.subr.bf16.mxu0 0
        %1298 = vmatpush1.bf16.msra.mxu0 0
        %1299 = vmatprep.subr.bf16.mxu0 0
        %1300 = vmatpush1.bf16.msra.mxu0 0
        %1301 = vmatprep.subr.bf16.mxu0 0
        %1302 = vmatpush1.bf16.msra.mxu0 0
        %1303 = vmatprep.mubr.bf16.mxu0 0
        %1304 = vmatmul.mubr.bf16.gmra.mrb[0].mxu0 %v575
        %v1305 = vpop.f32.mrb[0].mxu0
        %v1306 = vadd.f32 0.0, %v1305
        %v1307 = vpop.f32.mrb[0].mxu0
        %v1308 = vpop.f32.mrb[0].mxu0
        %v1309 = vadd.f32 0.0, %v1308
        %v1310 = vpop.f32.mrb[0].mxu0
        %1311 = vdwg.mxu0
        %1312 = vmatprep.subr.bf16.mxu0 0
        %1313 = vmatpush1.bf16.msra.mxu0 %v1127
        %1314 = vmatprep.subr.bf16.mxu0 0
        %1315 = vmatpush1.bf16.msra.mxu0 0
        %1316 = vmatprep.subr.bf16.mxu0 0
        %1317 = vmatpush1.bf16.msra.mxu0 0
        %1318 = vmatprep.subr.bf16.mxu0 0
        %1319 = vmatpush1.bf16.msra.mxu0 0
        %1320 = vmatprep.subr.bf16.mxu0 0
        %1321 = vmatpush1.bf16.msra.mxu0 0
        %1322 = vmatprep.subr.bf16.mxu0 0
        %1323 = vmatpush1.bf16.msra.mxu0 0
        %1324 = vmatprep.subr.bf16.mxu0 0
        %1325 = vmatpush1.bf16.msra.mxu0 0
        %1326 = vmatprep.subr.bf16.mxu0 0
        %1327 = vmatpush1.bf16.msra.mxu0 0
        %1328 = vmatprep.subr.bf16.mxu0 0
        %1329 = vmatpush1.bf16.msra.mxu0 0
        %1330 = vmatprep.subr.bf16.mxu0 0
        %1331 = vmatpush1.bf16.msra.mxu0 0
        %1332 = vmatprep.subr.bf16.mxu0 0
        %1333 = vmatpush1.bf16.msra.mxu0 0
        %1334 = vmatprep.subr.bf16.mxu0 0
        %1335 = vmatpush1.bf16.msra.mxu0 0
        %1336 = vmatprep.subr.bf16.mxu0 0
        %1337 = vmatpush1.bf16.msra.mxu0 0
        %1338 = vmatprep.subr.bf16.mxu0 0
        %1339 = vmatpush1.bf16.msra.mxu0 0
        %1340 = vmatprep.subr.bf16.mxu0 0
        %1341 = vmatpush1.bf16.msra.mxu0 0
        %1342 = vmatprep.subr.bf16.mxu0 0
        %1343 = vmatpush1.bf16.msra.mxu0 0
        %1344 = vmatprep.mubr.bf16.mxu0 0
        %1345 = vmatmul.mubr.bf16.gmra.mrb[0].mxu0 %v630
        %v1346 = vpop.f32.mrb[0].mxu0
        %v1347 = vadd.f32 0.0, %v1346
        %v1348 = vpop.f32.mrb[0].mxu0
        %v1349 = vpop.f32.mrb[0].mxu0
        %v1350 = vadd.f32 0.0, %v1349
        %v1351 = vpop.f32.mrb[0].mxu0
        %1352 = vdwg.mxu0
        %1353 = vmatprep.subr.bf16.mxu0 0
        %1354 = vmatpush1.bf16.msra.mxu0 %v1128
        %1355 = vmatprep.subr.bf16.mxu0 0
        %1356 = vmatpush1.bf16.msra.mxu0 0
        %1357 = vmatprep.subr.bf16.mxu0 0
        %1358 = vmatpush1.bf16.msra.mxu0 0
        %1359 = vmatprep.subr.bf16.mxu0 0
        %1360 = vmatpush1.bf16.msra.mxu0 0
        %1361 = vmatprep.subr.bf16.mxu0 0
        %1362 = vmatpush1.bf16.msra.mxu0 0
        %1363 = vmatprep.subr.bf16.mxu0 0
        %1364 = vmatpush1.bf16.msra.mxu0 0
        %1365 = vmatprep.subr.bf16.mxu0 0
        %1366 = vmatpush1.bf16.msra.mxu0 0
        %1367 = vmatprep.subr.bf16.mxu0 0
        %1368 = vmatpush1.bf16.msra.mxu0 0
        %1369 = vmatprep.subr.bf16.mxu0 0
        %1370 = vmatpush1.bf16.msra.mxu0 0
        %1371 = vmatprep.subr.bf16.mxu0 0
        %1372 = vmatpush1.bf16.msra.mxu0 0
        %1373 = vmatprep.subr.bf16.mxu0 0
        %1374 = vmatpush1.bf16.msra.mxu0 0
        %1375 = vmatprep.subr.bf16.mxu0 0
        %1376 = vmatpush1.bf16.msra.mxu0 0
        %1377 = vmatprep.subr.bf16.mxu0 0
        %1378 = vmatpush1.bf16.msra.mxu0 0
        %1379 = vmatprep.subr.bf16.mxu0 0
        %1380 = vmatpush1.bf16.msra.mxu0 0
        %1381 = vmatprep.subr.bf16.mxu0 0
        %1382 = vmatpush1.bf16.msra.mxu0 0
        %1383 = vmatprep.subr.bf16.mxu0 0
        %1384 = vmatpush1.bf16.msra.mxu0 0
        %1385 = vmatprep.mubr.bf16.mxu0 0
        %1386 = vmatmul.mubr.bf16.gmra.mrb[0].mxu0 %v685
        %v1387 = vpop.f32.mrb[0].mxu0
        %v1388 = vadd.f32 0.0, %v1387
        %v1389 = vpop.f32.mrb[0].mxu0
        %v1390 = vpop.f32.mrb[0].mxu0
        %v1391 = vadd.f32 0.0, %v1390
        %v1392 = vpop.f32.mrb[0].mxu0
        %1393 = vdwg.mxu0
        %1394 = vmatprep.subr.bf16.mxu0 0
        %1395 = vmatpush1.bf16.msra.mxu0 %v1129
        %1396 = vmatprep.subr.bf16.mxu0 0
        %1397 = vmatpush1.bf16.msra.mxu0 0
        %1398 = vmatprep.subr.bf16.mxu0 0
        %1399 = vmatpush1.bf16.msra.mxu0 0
        %1400 = vmatprep.subr.bf16.mxu0 0
        %1401 = vmatpush1.bf16.msra.mxu0 0
        %1402 = vmatprep.subr.bf16.mxu0 0
        %1403 = vmatpush1.bf16.msra.mxu0 0
        %1404 = vmatprep.subr.bf16.mxu0 0
        %1405 = vmatpush1.bf16.msra.mxu0 0
        %1406 = vmatprep.subr.bf16.mxu0 0
        %1407 = vmatpush1.bf16.msra.mxu0 0
        %1408 = vmatprep.subr.bf16.mxu0 0
        %1409 = vmatpush1.bf16.msra.mxu0 0
        %1410 = vmatprep.subr.bf16.mxu0 0
        %1411 = vmatpush1.bf16.msra.mxu0 0
        %1412 = vmatprep.subr.bf16.mxu0 0
        %1413 = vmatpush1.bf16.msra.mxu0 0
        %1414 = vmatprep.subr.bf16.mxu0 0
        %1415 = vmatpush1.bf16.msra.mxu0 0
        %1416 = vmatprep.subr.bf16.mxu0 0
        %1417 = vmatpush1.bf16.msra.mxu0 0
        %1418 = vmatprep.subr.bf16.mxu0 0
        %1419 = vmatpush1.bf16.msra.mxu0 0
        %1420 = vmatprep.subr.bf16.mxu0 0
        %1421 = vmatpush1.bf16.msra.mxu0 0
        %1422 = vmatprep.subr.bf16.mxu0 0
        %1423 = vmatpush1.bf16.msra.mxu0 0
        %1424 = vmatprep.subr.bf16.mxu0 0
        %1425 = vmatpush1.bf16.msra.mxu0 0
        %1426 = vmatprep.mubr.bf16.mxu0 0
        %1427 = vmatmul.mubr.bf16.gmra.mrb[0].mxu0 %v740
        %v1428 = vpop.f32.mrb[0].mxu0
        %v1429 = vadd.f32 0.0, %v1428
        %v1430 = vpop.f32.mrb[0].mxu0
        %v1431 = vpop.f32.mrb[0].mxu0
        %v1432 = vadd.f32 0.0, %v1431
        %v1433 = vpop.f32.mrb[0].mxu0
        %1434 = vdwg.mxu0
        %1435 = vmatprep.subr.bf16.mxu0 0
        %1436 = vmatpush1.bf16.msra.mxu0 %v1130
        %1437 = vmatprep.subr.bf16.mxu0 0
        %1438 = vmatpush1.bf16.msra.mxu0 0
        %1439 = vmatprep.subr.bf16.mxu0 0
        %1440 = vmatpush1.bf16.msra.mxu0 0
        %1441 = vmatprep.subr.bf16.mxu0 0
        %1442 = vmatpush1.bf16.msra.mxu0 0
        %1443 = vmatprep.subr.bf16.mxu0 0
        %1444 = vmatpush1.bf16.msra.mxu0 0
        %1445 = vmatprep.subr.bf16.mxu0 0
        %1446 = vmatpush1.bf16.msra.mxu0 0
        %1447 = vmatprep.subr.bf16.mxu0 0
        %1448 = vmatpush1.bf16.msra.mxu0 0
        %1449 = vmatprep.subr.bf16.mxu0 0
        %1450 = vmatpush1.bf16.msra.mxu0 0
        %1451 = vmatprep.subr.bf16.mxu0 0
        %1452 = vmatpush1.bf16.msra.mxu0 0
        %1453 = vmatprep.subr.bf16.mxu0 0
        %1454 = vmatpush1.bf16.msra.mxu0 0
        %1455 = vmatprep.subr.bf16.mxu0 0
        %1456 = vmatpush1.bf16.msra.mxu0 0
        %1457 = vmatprep.subr.bf16.mxu0 0
        %1458 = vmatpush1.bf16.msra.mxu0 0
        %1459 = vmatprep.subr.bf16.mxu0 0
        %1460 = vmatpush1.bf16.msra.mxu0 0
        %1461 = vmatprep.subr.bf16.mxu0 0
        %1462 = vmatpush1.bf16.msra.mxu0 0
        %1463 = vmatprep.subr.bf16.mxu0 0
        %1464 = vmatpush1.bf16.msra.mxu0 0
        %1465 = vmatprep.subr.bf16.mxu0 0
        %1466 = vmatpush1.bf16.msra.mxu0 0
        %1467 = vmatprep.mubr.bf16.mxu0 0
        %1468 = vmatmul.mubr.bf16.gmra.mrb[0].mxu0 %v795
        %v1469 = vpop.f32.mrb[0].mxu0
        %v1470 = vadd.f32 0.0, %v1469
        %v1471 = vpop.f32.mrb[0].mxu0
        %v1472 = vpop.f32.mrb[0].mxu0
        %v1473 = vadd.f32 0.0, %v1472
        %v1474 = vpop.f32.mrb[0].mxu0
        %1475 = vdwg.mxu0
        %v1476 = vpack.c.bf16 %v1186, %v1183
        %v1477 = vpack.c.bf16 %v1227, %v1224
        %v1478 = vpack.c.bf16 %v1268, %v1265
        %v1479 = vpack.c.bf16 %v1309, %v1306
        %v1480 = vpack.c.bf16 %v1350, %v1347
        %v1481 = vpack.c.bf16 %v1391, %v1388
        %v1482 = vpack.c.bf16 %v1432, %v1429
        %v1483 = vpack.c.bf16 %v1473, %v1470
        %v1500 = vunpack.c.l.b16 %v1131
        %v1501 = vunpack.c.l.b16 %v1132
        %v1502 = vunpack.c.l.b16 %v1133
        %v1503 = vunpack.c.l.b16 %v1134
        %v1504 = vunpack.c.l.b16 %v1135
        %v1505 = vunpack.c.l.b16 %v1136
        %v1506 = vunpack.c.l.b16 %v1137
        %v1507 = vunpack.c.l.b16 %v1138
        %v1508 = vunpack.c.l.b16 %v1139
        %v1509 = vunpack.c.l.b16 %v1140
        %v1510 = vunpack.c.l.b16 %v1141
        %v1511 = vunpack.c.l.b16 %v1142
        %v1512 = vunpack.c.l.b16 %v1143
        %v1513 = vunpack.c.l.b16 %v1144
        %v1514 = vunpack.c.l.b16 %v1145
        %v1515 = vunpack.c.l.b16 %v1146
        %v1516 = vpack.c.b16 %v1501, %v1500
        %v1517 = vpack.c.b16 %v1503, %v1502
        %v1518 = vpack.c.b16 %v1505, %v1504
        %v1519 = vpack.c.b16 %v1507, %v1506
        %v1520 = vpack.c.b16 %v1509, %v1508
        %v1521 = vpack.c.b16 %v1511, %v1510
        %v1522 = vpack.c.b16 %v1513, %v1512
        %v1523 = vpack.c.b16 %v1515, %v1514
        %1532 = vmatprep.subr.bf16.mxu0 0
        %1533 = vmatpush1.bf16.msra.mxu0 %v1516
        %1534 = vmatprep.subr.bf16.mxu0 0
        %1535 = vmatpush1.bf16.msra.mxu0 %v1517
        %1536 = vmatprep.subr.bf16.mxu0 0
        %1537 = vmatpush1.bf16.msra.mxu0 %v1518
        %1538 = vmatprep.subr.bf16.mxu0 0
        %1539 = vmatpush1.bf16.msra.mxu0 %v1519
        %1540 = vmatprep.subr.bf16.mxu0 0
        %1541 = vmatpush1.bf16.msra.mxu0 %v1520
        %1542 = vmatprep.subr.bf16.mxu0 0
        %1543 = vmatpush1.bf16.msra.mxu0 %v1521
        %1544 = vmatprep.subr.bf16.mxu0 0
        %1545 = vmatpush1.bf16.msra.mxu0 %v1522
        %1546 = vmatprep.subr.bf16.mxu0 0
        %1547 = vmatpush1.bf16.msra.mxu0 %v1523
        %1548 = vmatprep.subr.bf16.mxu0 0
        %1549 = vmatpush1.bf16.msra.mxu0 0
        %1550 = vmatprep.subr.bf16.mxu0 0
        %1551 = vmatpush1.bf16.msra.mxu0 0
        %1552 = vmatprep.subr.bf16.mxu0 0
        %1553 = vmatpush1.bf16.msra.mxu0 0
        %1554 = vmatprep.subr.bf16.mxu0 0
        %1555 = vmatpush1.bf16.msra.mxu0 0
        %1556 = vmatprep.subr.bf16.mxu0 0
        %1557 = vmatpush1.bf16.msra.mxu0 0
        %1558 = vmatprep.subr.bf16.mxu0 0
        %1559 = vmatpush1.bf16.msra.mxu0 0
        %1560 = vmatprep.subr.bf16.mxu0 0
        %1561 = vmatpush1.bf16.msra.mxu0 0
        %1562 = vmatprep.subr.bf16.mxu0 0
        %1563 = vmatpush1.bf16.msra.mxu0 0
        %1564 = vmatprep.mubr.bf16.mxu0 0
        %1565 = vmatmul.mubr.bf16.gmra.mrb[0].mxu0 %v1476
        %v1566 = vpop.f32.mrb[0].mxu0
        %v1567 = vadd.f32 0.0, %v1566
        %v1568 = vpop.f32.mrb[0].mxu0
        %v1569 = vpop.f32.mrb[0].mxu0
        %v1570 = vadd.f32 0.0, %v1569
        %v1571 = vpop.f32.mrb[0].mxu0
        %1572 = vmatprep.mubr.bf16.mxu0 0
        %1573 = vmatmul.mubr.bf16.gmra.mrb[0].mxu0 %v1477
        %v1574 = vpop.f32.mrb[0].mxu0
        %v1575 = vadd.f32 0.0, %v1574
        %v1576 = vpop.f32.mrb[0].mxu0
        %v1577 = vpop.f32.mrb[0].mxu0
        %v1578 = vadd.f32 0.0, %v1577
        %v1579 = vpop.f32.mrb[0].mxu0
        %1580 = vmatprep.mubr.bf16.mxu0 0
        %1581 = vmatmul.mubr.bf16.gmra.mrb[0].mxu0 %v1478
        %v1582 = vpop.f32.mrb[0].mxu0
        %v1583 = vadd.f32 0.0, %v1582
        %v1584 = vpop.f32.mrb[0].mxu0
        %v1585 = vpop.f32.mrb[0].mxu0
        %v1586 = vadd.f32 0.0, %v1585
        %v1587 = vpop.f32.mrb[0].mxu0
        %1588 = vmatprep.mubr.bf16.mxu0 0
        %1589 = vmatmul.mubr.bf16.gmra.mrb[0].mxu0 %v1479
        %v1590 = vpop.f32.mrb[0].mxu0
        %v1591 = vadd.f32 0.0, %v1590
        %v1592 = vpop.f32.mrb[0].mxu0
        %v1593 = vpop.f32.mrb[0].mxu0
        %v1594 = vadd.f32 0.0, %v1593
        %v1595 = vpop.f32.mrb[0].mxu0
        %1596 = vmatprep.mubr.bf16.mxu0 0
        %1597 = vmatmul.mubr.bf16.gmra.mrb[0].mxu0 %v1480
        %v1598 = vpop.f32.mrb[0].mxu0
        %v1599 = vadd.f32 0.0, %v1598
        %v1600 = vpop.f32.mrb[0].mxu0
        %v1601 = vpop.f32.mrb[0].mxu0
        %v1602 = vadd.f32 0.0, %v1601
        %v1603 = vpop.f32.mrb[0].mxu0
        %1604 = vmatprep.mubr.bf16.mxu0 0
        %1605 = vmatmul.mubr.bf16.gmra.mrb[0].mxu0 %v1481
        %v1606 = vpop.f32.mrb[0].mxu0
        %v1607 = vadd.f32 0.0, %v1606
        %v1608 = vpop.f32.mrb[0].mxu0
        %v1609 = vpop.f32.mrb[0].mxu0
        %v1610 = vadd.f32 0.0, %v1609
        %v1611 = vpop.f32.mrb[0].mxu0
        %1612 = vmatprep.mubr.bf16.mxu0 0
        %1613 = vmatmul.mubr.bf16.gmra.mrb[0].mxu0 %v1482
        %v1614 = vpop.f32.mrb[0].mxu0
        %v1615 = vadd.f32 0.0, %v1614
        %v1616 = vpop.f32.mrb[0].mxu0
        %v1617 = vpop.f32.mrb[0].mxu0
        %v1618 = vadd.f32 0.0, %v1617
        %v1619 = vpop.f32.mrb[0].mxu0
        %1620 = vmatprep.mubr.bf16.mxu0 0
        %1621 = vmatmul.mubr.bf16.gmra.mrb[0].mxu0 %v1483
        %v1622 = vpop.f32.mrb[0].mxu0
        %v1623 = vadd.f32 0.0, %v1622
        %v1624 = vpop.f32.mrb[0].mxu0
        %v1625 = vpop.f32.mrb[0].mxu0
        %v1626 = vadd.f32 0.0, %v1625
        %v1627 = vpop.f32.mrb[0].mxu0
        %1628 = vdwg.mxu0
        %v1629 = vlaneseq
        %v1630 = vshrl.u32 %v1629, 7
        %v1631 = vsub.s32 0, %v1630
        %v1632 = vrot.slane %v1147, %v1631
        %v1633 = vmul.f32 %v1632, %v998
        %v1634 = vmul.f32 %v1632, %v1003
        %v1635 = vmul.f32 %v1632, %v1008
        %v1636 = vmul.f32 %v1632, %v1013
        %v1637 = vmul.f32 %v1632, %v1018
        %v1638 = vmul.f32 %v1632, %v1023
        %v1639 = vmul.f32 %v1632, %v1028
        %v1640 = vmul.f32 %v1632, %v1033
        %v1641 = vmul.f32 %v1632, %v1038
        %v1642 = vmul.f32 %v1632, %v1043
        %v1643 = vmul.f32 %v1632, %v1048
        %v1644 = vmul.f32 %v1632, %v1053
        %v1645 = vmul.f32 %v1632, %v1058
        %v1646 = vmul.f32 %v1632, %v1063
        %v1647 = vmul.f32 %v1632, %v1068
        %v1648 = vmul.f32 %v1632, %v1073
        %v1649 = vadd.f32 %v1567, %v1633
        %v1650 = vadd.f32 %v1570, %v1634
        %v1651 = vadd.f32 %v1575, %v1635
        %v1652 = vadd.f32 %v1578, %v1636
        %v1653 = vadd.f32 %v1583, %v1637
        %v1654 = vadd.f32 %v1586, %v1638
        %v1655 = vadd.f32 %v1591, %v1639
        %v1656 = vadd.f32 %v1594, %v1640
        %v1657 = vadd.f32 %v1599, %v1641
        %v1658 = vadd.f32 %v1602, %v1642
        %v1659 = vadd.f32 %v1607, %v1643
        %v1660 = vadd.f32 %v1610, %v1644
        %v1661 = vadd.f32 %v1615, %v1645
        %v1662 = vadd.f32 %v1618, %v1646
        %v1663 = vadd.f32 %v1623, %v1647
        %v1664 = vadd.f32 %v1626, %v1648
        %v1665 = vmax.f32 %v1649, 0.0
        %v1666 = vmax.f32 %v1650, 0.0
        %v1667 = vmax.f32 %v1651, 0.0
        %v1668 = vmax.f32 %v1652, 0.0
        %v1669 = vmax.f32 %v1653, 0.0
        %v1670 = vmax.f32 %v1654, 0.0
        %v1671 = vmax.f32 %v1655, 0.0
        %v1672 = vmax.f32 %v1656, 0.0
        %v1673 = vmax.f32 %v1657, 0.0
        %v1674 = vmax.f32 %v1658, 0.0
        %v1675 = vmax.f32 %v1659, 0.0
        %v1676 = vmax.f32 %v1660, 0.0
        %v1677 = vmax.f32 %v1661, 0.0
        %v1678 = vmax.f32 %v1662, 0.0
        %v1679 = vmax.f32 %v1663, 0.0
        %v1680 = vmax.f32 %v1664, 0.0
        %1681 = vset.pattern.permute.xlu0 1
        %1682 = vperm.xlu0 %1681, %v364
        %v1683 = vpop.permute.xlu0 %1682
        %1685 = vset.pattern.permute.xlu0 1
        %1686 = vperm.xlu0 %1685, %v365
        %v1687 = vpop.permute.xlu0 %1686
        %1689 = vset.pattern.permute.xlu0 1
        %1690 = vperm.xlu0 %1689, %v366
        %v1691 = vpop.permute.xlu0 %1690
        %1693 = vset.pattern.permute.xlu0 1
        %1694 = vperm.xlu0 %1693, %v367
        %v1695 = vpop.permute.xlu0 %1694
        %1697 = vset.pattern.permute.xlu0 1
        %1698 = vperm.xlu0 %1697, %v368
        %v1699 = vpop.permute.xlu0 %1698
        %1701 = vset.pattern.permute.xlu0 1
        %1702 = vperm.xlu0 %1701, %v369
        %v1703 = vpop.permute.xlu0 %1702
        %1705 = vset.pattern.permute.xlu0 1
        %1706 = vperm.xlu0 %1705, %v370
        %v1707 = vpop.permute.xlu0 %1706
        %1709 = vset.pattern.permute.xlu0 1
        %1710 = vperm.xlu0 %1709, %v371
        %v1711 = vpop.permute.xlu0 %1710
        %1713 = vset.pattern.permute.xlu0 1
        %1714 = vperm.xlu0 %1713, %v372
        %v1715 = vpop.permute.xlu0 %1714
        %1717 = vset.pattern.permute.xlu0 1
        %1718 = vperm.xlu0 %1717, %v373
        %v1719 = vpop.permute.xlu0 %1718
        %1721 = vset.pattern.permute.xlu0 1
        %1722 = vperm.xlu0 %1721, %v374
        %v1723 = vpop.permute.xlu0 %1722
        %1725 = vset.pattern.permute.xlu0 1
        %1726 = vperm.xlu0 %1725, %v375
        %v1727 = vpop.permute.xlu0 %1726
        %1729 = vset.pattern.permute.xlu0 1
        %1730 = vperm.xlu0 %1729, %v376
        %v1731 = vpop.permute.xlu0 %1730
        %1733 = vset.pattern.permute.xlu0 1
        %1734 = vperm.xlu0 %1733, %v377
        %v1735 = vpop.permute.xlu0 %1734
        %1737 = vset.pattern.permute.xlu0 1
        %1738 = vperm.xlu0 %1737, %v378
        %v1739 = vpop.permute.xlu0 %1738
        %1741 = vset.pattern.permute.xlu0 1
        %1742 = vperm.xlu0 %1741, %v379
        %v1743 = vpop.permute.xlu0 %1742
        %v1745 = vadd.f32 %v1665, %v1683
        %v1746 = vadd.f32 %v1666, %v1687
        %v1747 = vadd.f32 %v1667, %v1691
        %v1748 = vadd.f32 %v1668, %v1695
        %v1749 = vadd.f32 %v1669, %v1699
        %v1750 = vadd.f32 %v1670, %v1703
        %v1751 = vadd.f32 %v1671, %v1707
        %v1752 = vadd.f32 %v1672, %v1711
        %v1753 = vadd.f32 %v1673, %v1715
        %v1754 = vadd.f32 %v1674, %v1719
        %v1755 = vadd.f32 %v1675, %v1723
        %v1756 = vadd.f32 %v1676, %v1727
        %v1757 = vadd.f32 %v1677, %v1731
        %v1758 = vadd.f32 %v1678, %v1735
        %v1759 = vadd.f32 %v1679, %v1739
        %v1760 = vadd.f32 %v1680, %v1743
        %v1761 = vmax.f32 %v1745, %v1746
        %v1762 = vrot.slane %v1761, 4
        %v1763 = vmax.f32 %v1761, %v1762
        %v1764 = vrot.slane %v1763, 2
        %v1765 = vmax.f32 %v1763, %v1764
        %v1766 = vrot.slane %v1765, 1
        %v1767 = vmax.f32 %v1765, %v1766
        %v1768 = vmax.f32 %v1747, %v1748
        %v1769 = vrot.slane %v1768, 4
        %v1770 = vmax.f32 %v1768, %v1769
        %v1771 = vrot.slane %v1770, 2
        %v1772 = vmax.f32 %v1770, %v1771
        %v1773 = vrot.slane %v1772, 1
        %v1774 = vmax.f32 %v1772, %v1773
        %v1775 = vmax.f32 %v1749, %v1750
        %v1776 = vrot.slane %v1775, 4
        %v1777 = vmax.f32 %v1775, %v1776
        %v1778 = vrot.slane %v1777, 2
        %v1779 = vmax.f32 %v1777, %v1778
        %v1780 = vrot.slane %v1779, 1
        %v1781 = vmax.f32 %v1779, %v1780
        %v1782 = vmax.f32 %v1751, %v1752
        %v1783 = vrot.slane %v1782, 4
        %v1784 = vmax.f32 %v1782, %v1783
        %v1785 = vrot.slane %v1784, 2
        %v1786 = vmax.f32 %v1784, %v1785
        %v1787 = vrot.slane %v1786, 1
        %v1788 = vmax.f32 %v1786, %v1787
        %v1789 = vmax.f32 %v1753, %v1754
        %v1790 = vrot.slane %v1789, 4
        %v1791 = vmax.f32 %v1789, %v1790
        %v1792 = vrot.slane %v1791, 2
        %v1793 = vmax.f32 %v1791, %v1792
        %v1794 = vrot.slane %v1793, 1
        %v1795 = vmax.f32 %v1793, %v1794
        %v1796 = vmax.f32 %v1755, %v1756
        %v1797 = vrot.slane %v1796, 4
        %v1798 = vmax.f32 %v1796, %v1797
        %v1799 = vrot.slane %v1798, 2
        %v1800 = vmax.f32 %v1798, %v1799
        %v1801 = vrot.slane %v1800, 1
        %v1802 = vmax.f32 %v1800, %v1801
        %v1803 = vmax.f32 %v1757, %v1758
        %v1804 = vrot.slane %v1803, 4
        %v1805 = vmax.f32 %v1803, %v1804
        %v1806 = vrot.slane %v1805, 2
        %v1807 = vmax.f32 %v1805, %v1806
        %v1808 = vrot.slane %v1807, 1
        %v1809 = vmax.f32 %v1807, %v1808
        %v1810 = vmax.f32 %v1759, %v1760
        %v1811 = vrot.slane %v1810, 4
        %v1812 = vmax.f32 %v1810, %v1811
        %v1813 = vrot.slane %v1812, 2
        %v1814 = vmax.f32 %v1812, %v1813
        %v1815 = vrot.slane %v1814, 1
        %v1816 = vmax.f32 %v1814, %v1815
        %1817 = vset.pattern.permute.xlu0 2
        %1818 = vperm.xlu0 %1817, %v364
        %v1819 = vpop.permute.xlu0 %1818
        %1821 = vset.pattern.permute.xlu0 2
        %1822 = vperm.xlu0 %1821, %v365
        %v1823 = vpop.permute.xlu0 %1822
        %1825 = vset.pattern.permute.xlu0 2
        %1826 = vperm.xlu0 %1825, %v366
        %v1827 = vpop.permute.xlu0 %1826
        %1829 = vset.pattern.permute.xlu0 2
        %1830 = vperm.xlu0 %1829, %v367
        %v1831 = vpop.permute.xlu0 %1830
        %1833 = vset.pattern.permute.xlu0 2
        %1834 = vperm.xlu0 %1833, %v368
        %v1835 = vpop.permute.xlu0 %1834
        %1837 = vset.pattern.permute.xlu0 2
        %1838 = vperm.xlu0 %1837, %v369
        %v1839 = vpop.permute.xlu0 %1838
        %1841 = vset.pattern.permute.xlu0 2
        %1842 = vperm.xlu0 %1841, %v370
        %v1843 = vpop.permute.xlu0 %1842
        %1845 = vset.pattern.permute.xlu0 2
        %1846 = vperm.xlu0 %1845, %v371
        %v1847 = vpop.permute.xlu0 %1846
        %1849 = vset.pattern.permute.xlu0 2
        %1850 = vperm.xlu0 %1849, %v372
        %v1851 = vpop.permute.xlu0 %1850
        %1853 = vset.pattern.permute.xlu0 2
        %1854 = vperm.xlu0 %1853, %v373
        %v1855 = vpop.permute.xlu0 %1854
        %1857 = vset.pattern.permute.xlu0 2
        %1858 = vperm.xlu0 %1857, %v374
        %v1859 = vpop.permute.xlu0 %1858
        %1861 = vset.pattern.permute.xlu0 2
        %1862 = vperm.xlu0 %1861, %v375
        %v1863 = vpop.permute.xlu0 %1862
        %1865 = vset.pattern.permute.xlu0 2
        %1866 = vperm.xlu0 %1865, %v376
        %v1867 = vpop.permute.xlu0 %1866
        %1869 = vset.pattern.permute.xlu0 2
        %1870 = vperm.xlu0 %1869, %v377
        %v1871 = vpop.permute.xlu0 %1870
        %1873 = vset.pattern.permute.xlu0 2
        %1874 = vperm.xlu0 %1873, %v378
        %v1875 = vpop.permute.xlu0 %1874
        %1877 = vset.pattern.permute.xlu0 2
        %1878 = vperm.xlu0 %1877, %v379
        %v1879 = vpop.permute.xlu0 %1878
        %v1881 = vadd.f32 %v1665, %v1819
        %v1882 = vadd.f32 %v1666, %v1823
        %v1883 = vadd.f32 %v1667, %v1827
        %v1884 = vadd.f32 %v1668, %v1831
        %v1885 = vadd.f32 %v1669, %v1835
        %v1886 = vadd.f32 %v1670, %v1839
        %v1887 = vadd.f32 %v1671, %v1843
        %v1888 = vadd.f32 %v1672, %v1847
        %v1889 = vadd.f32 %v1673, %v1851
        %v1890 = vadd.f32 %v1674, %v1855
        %v1891 = vadd.f32 %v1675, %v1859
        %v1892 = vadd.f32 %v1676, %v1863
        %v1893 = vadd.f32 %v1677, %v1867
        %v1894 = vadd.f32 %v1678, %v1871
        %v1895 = vadd.f32 %v1679, %v1875
        %v1896 = vadd.f32 %v1680, %v1879
        %v1897 = vmax.f32 %v1881, %v1882
        %v1898 = vrot.slane %v1897, 4
        %v1899 = vmax.f32 %v1897, %v1898
        %v1900 = vrot.slane %v1899, 2
        %v1901 = vmax.f32 %v1899, %v1900
        %v1902 = vrot.slane %v1901, 1
        %v1903 = vmax.f32 %v1901, %v1902
        %v1904 = vmax.f32 %v1883, %v1884
        %v1905 = vrot.slane %v1904, 4
        %v1906 = vmax.f32 %v1904, %v1905
        %v1907 = vrot.slane %v1906, 2
        %v1908 = vmax.f32 %v1906, %v1907
        %v1909 = vrot.slane %v1908, 1
        %v1910 = vmax.f32 %v1908, %v1909
        %v1911 = vmax.f32 %v1885, %v1886
        %v1912 = vrot.slane %v1911, 4
        %v1913 = vmax.f32 %v1911, %v1912
        %v1914 = vrot.slane %v1913, 2
        %v1915 = vmax.f32 %v1913, %v1914
        %v1916 = vrot.slane %v1915, 1
        %v1917 = vmax.f32 %v1915, %v1916
        %v1918 = vmax.f32 %v1887, %v1888
        %v1919 = vrot.slane %v1918, 4
        %v1920 = vmax.f32 %v1918, %v1919
        %v1921 = vrot.slane %v1920, 2
        %v1922 = vmax.f32 %v1920, %v1921
        %v1923 = vrot.slane %v1922, 1
        %v1924 = vmax.f32 %v1922, %v1923
        %v1925 = vmax.f32 %v1889, %v1890
        %v1926 = vrot.slane %v1925, 4
        %v1927 = vmax.f32 %v1925, %v1926
        %v1928 = vrot.slane %v1927, 2
        %v1929 = vmax.f32 %v1927, %v1928
        %v1930 = vrot.slane %v1929, 1
        %v1931 = vmax.f32 %v1929, %v1930
        %v1932 = vmax.f32 %v1891, %v1892
        %v1933 = vrot.slane %v1932, 4
        %v1934 = vmax.f32 %v1932, %v1933
        %v1935 = vrot.slane %v1934, 2
        %v1936 = vmax.f32 %v1934, %v1935
        %v1937 = vrot.slane %v1936, 1
        %v1938 = vmax.f32 %v1936, %v1937
        %v1939 = vmax.f32 %v1893, %v1894
        %v1940 = vrot.slane %v1939, 4
        %v1941 = vmax.f32 %v1939, %v1940
        %v1942 = vrot.slane %v1941, 2
        %v1943 = vmax.f32 %v1941, %v1942
        %v1944 = vrot.slane %v1943, 1
        %v1945 = vmax.f32 %v1943, %v1944
        %v1946 = vmax.f32 %v1895, %v1896
        %v1947 = vrot.slane %v1946, 4
        %v1948 = vmax.f32 %v1946, %v1947
        %v1949 = vrot.slane %v1948, 2
        %v1950 = vmax.f32 %v1948, %v1949
        %v1951 = vrot.slane %v1950, 1
        %v1952 = vmax.f32 %v1950, %v1951
        %1953 = vset.pattern.permute.xlu0 3
        %1954 = vperm.xlu0 %1953, %v364
        %v1955 = vpop.permute.xlu0 %1954
        %1957 = vset.pattern.permute.xlu0 3
        %1958 = vperm.xlu0 %1957, %v365
        %v1959 = vpop.permute.xlu0 %1958
        %1961 = vset.pattern.permute.xlu0 3
        %1962 = vperm.xlu0 %1961, %v366
        %v1963 = vpop.permute.xlu0 %1962
        %1965 = vset.pattern.permute.xlu0 3
        %1966 = vperm.xlu0 %1965, %v367
        %v1967 = vpop.permute.xlu0 %1966
        %1969 = vset.pattern.permute.xlu0 3
        %1970 = vperm.xlu0 %1969, %v368
        %v1971 = vpop.permute.xlu0 %1970
        %1973 = vset.pattern.permute.xlu0 3
        %1974 = vperm.xlu0 %1973, %v369
        %v1975 = vpop.permute.xlu0 %1974
        %1977 = vset.pattern.permute.xlu0 3
        %1978 = vperm.xlu0 %1977, %v370
        %v1979 = vpop.permute.xlu0 %1978
        %1981 = vset.pattern.permute.xlu0 3
        %1982 = vperm.xlu0 %1981, %v371
        %v1983 = vpop.permute.xlu0 %1982
        %1985 = vset.pattern.permute.xlu0 3
        %1986 = vperm.xlu0 %1985, %v372
        %v1987 = vpop.permute.xlu0 %1986
        %1989 = vset.pattern.permute.xlu0 3
        %1990 = vperm.xlu0 %1989, %v373
        %v1991 = vpop.permute.xlu0 %1990
        %1993 = vset.pattern.permute.xlu0 3
        %1994 = vperm.xlu0 %1993, %v374
        %v1995 = vpop.permute.xlu0 %1994
        %1997 = vset.pattern.permute.xlu0 3
        %1998 = vperm.xlu0 %1997, %v375
        %v1999 = vpop.permute.xlu0 %1998
        %2001 = vset.pattern.permute.xlu0 3
        %2002 = vperm.xlu0 %2001, %v376
        %v2003 = vpop.permute.xlu0 %2002
        %2005 = vset.pattern.permute.xlu0 3
        %2006 = vperm.xlu0 %2005, %v377
        %v2007 = vpop.permute.xlu0 %2006
        %2009 = vset.pattern.permute.xlu0 3
        %2010 = vperm.xlu0 %2009, %v378
        %v2011 = vpop.permute.xlu0 %2010
        %2013 = vset.pattern.permute.xlu0 3
        %2014 = vperm.xlu0 %2013, %v379
        %v2015 = vpop.permute.xlu0 %2014
        %v2017 = vadd.f32 %v1665, %v1955
        %v2018 = vadd.f32 %v1666, %v1959
        %v2019 = vadd.f32 %v1667, %v1963
        %v2020 = vadd.f32 %v1668, %v1967
        %v2021 = vadd.f32 %v1669, %v1971
        %v2022 = vadd.f32 %v1670, %v1975
        %v2023 = vadd.f32 %v1671, %v1979
        %v2024 = vadd.f32 %v1672, %v1983
        %v2025 = vadd.f32 %v1673, %v1987
        %v2026 = vadd.f32 %v1674, %v1991
        %v2027 = vadd.f32 %v1675, %v1995
        %v2028 = vadd.f32 %v1676, %v1999
        %v2029 = vadd.f32 %v1677, %v2003
        %v2030 = vadd.f32 %v1678, %v2007
        %v2031 = vadd.f32 %v1679, %v2011
        %v2032 = vadd.f32 %v1680, %v2015
        %v2033 = vmax.f32 %v2017, %v2018
        %v2034 = vrot.slane %v2033, 4
        %v2035 = vmax.f32 %v2033, %v2034
        %v2036 = vrot.slane %v2035, 2
        %v2037 = vmax.f32 %v2035, %v2036
        %v2038 = vrot.slane %v2037, 1
        %v2039 = vmax.f32 %v2037, %v2038
        %v2040 = vmax.f32 %v2019, %v2020
        %v2041 = vrot.slane %v2040, 4
        %v2042 = vmax.f32 %v2040, %v2041
        %v2043 = vrot.slane %v2042, 2
        %v2044 = vmax.f32 %v2042, %v2043
        %v2045 = vrot.slane %v2044, 1
        %v2046 = vmax.f32 %v2044, %v2045
        %v2047 = vmax.f32 %v2021, %v2022
        %v2048 = vrot.slane %v2047, 4
        %v2049 = vmax.f32 %v2047, %v2048
        %v2050 = vrot.slane %v2049, 2
        %v2051 = vmax.f32 %v2049, %v2050
        %v2052 = vrot.slane %v2051, 1
        %v2053 = vmax.f32 %v2051, %v2052
        %v2054 = vmax.f32 %v2023, %v2024
        %v2055 = vrot.slane %v2054, 4
        %v2056 = vmax.f32 %v2054, %v2055
        %v2057 = vrot.slane %v2056, 2
        %v2058 = vmax.f32 %v2056, %v2057
        %v2059 = vrot.slane %v2058, 1
        %v2060 = vmax.f32 %v2058, %v2059
        %v2061 = vmax.f32 %v2025, %v2026
        %v2062 = vrot.slane %v2061, 4
        %v2063 = vmax.f32 %v2061, %v2062
        %v2064 = vrot.slane %v2063, 2
        %v2065 = vmax.f32 %v2063, %v2064
        %v2066 = vrot.slane %v2065, 1
        %v2067 = vmax.f32 %v2065, %v2066
        %v2068 = vmax.f32 %v2027, %v2028
        %v2069 = vrot.slane %v2068, 4
        %v2070 = vmax.f32 %v2068, %v2069
        %v2071 = vrot.slane %v2070, 2
        %v2072 = vmax.f32 %v2070, %v2071
        %v2073 = vrot.slane %v2072, 1
        %v2074 = vmax.f32 %v2072, %v2073
        %v2075 = vmax.f32 %v2029, %v2030
        %v2076 = vrot.slane %v2075, 4
        %v2077 = vmax.f32 %v2075, %v2076
        %v2078 = vrot.slane %v2077, 2
        %v2079 = vmax.f32 %v2077, %v2078
        %v2080 = vrot.slane %v2079, 1
        %v2081 = vmax.f32 %v2079, %v2080
        %v2082 = vmax.f32 %v2031, %v2032
        %v2083 = vrot.slane %v2082, 4
        %v2084 = vmax.f32 %v2082, %v2083
        %v2085 = vrot.slane %v2084, 2
        %v2086 = vmax.f32 %v2084, %v2085
        %v2087 = vrot.slane %v2086, 1
        %v2088 = vmax.f32 %v2086, %v2087
        %vm2097 = vcmask 1041409
        %v2098 = vsel %vm2097, %v1774, %v1767
        %vm2099 = vcmask 1042434
        %v2100 = vsel %vm2099, %v1781, %v2098
        %vm2101 = vcmask 1043459
        %v2102 = vsel %vm2101, %v1788, %v2100
        %vm2103 = vcmask 1044484
        %v2104 = vsel %vm2103, %v1795, %v2102
        %vm2105 = vcmask 1045509
        %v2106 = vsel %vm2105, %v1802, %v2104
        %vm2107 = vcmask 1046534
        %v2108 = vsel %vm2107, %v1809, %v2106
        %vm2109 = vcmask 1047559
        %v2110 = vsel %vm2109, %v1816, %v2108
        %2112 = vst [vmem:[%s309] sm:$0xff] %v2110
        %v2121 = vsel %vm2097, %v1910, %v1903
        %v2122 = vsel %vm2099, %v1917, %v2121
        %v2123 = vsel %vm2101, %v1924, %v2122
        %v2124 = vsel %vm2103, %v1931, %v2123
        %v2125 = vsel %vm2105, %v1938, %v2124
        %v2126 = vsel %vm2107, %v1945, %v2125
        %v2127 = vsel %vm2109, %v1952, %v2126
        %v2137 = vsel %vm2097, %v2046, %v2039
        %v2138 = vsel %vm2099, %v2053, %v2137
        %v2139 = vsel %vm2101, %v2060, %v2138
        %v2140 = vsel %vm2103, %v2067, %v2139
        %v2141 = vsel %vm2105, %v2074, %v2140
        %v2142 = vsel %vm2107, %v2081, %v2141
        %v2143 = vsel %vm2109, %v2088, %v2142
        %v2145 = vld [vmem:[#allocation2 + $0x80] sm:$0xf]
        %v2146 = vld [vmem:[#allocation2 + $0x84] sm:$0xf]
        %v2147 = vld [vmem:[#allocation2 + $0x88] sm:$0xf]
        %v2148 = vld [vmem:[#allocation2 + $0x8c] sm:$0xf]
        %v2149 = vld [vmem:[#allocation2 + $0x90] sm:$0xf]
        %v2150 = vld [vmem:[#allocation2 + $0x94] sm:$0xf]
        %v2151 = vld [vmem:[#allocation2 + $0x98] sm:$0xf]
        %v2152 = vld [vmem:[#allocation2 + $0x9c] sm:$0xf]
        %v2153 = vld [vmem:[#allocation2 + $0xa0] sm:$0xf]
        %v2154 = vld [vmem:[#allocation2 + $0xa4] sm:$0xf]
        %v2155 = vld [vmem:[#allocation2 + $0xa8] sm:$0xf]
        %v2156 = vld [vmem:[#allocation2 + $0xac] sm:$0xf]
        %v2157 = vld [vmem:[#allocation2 + $0xb0] sm:$0xf]
        %v2158 = vld [vmem:[#allocation2 + $0xb4] sm:$0xf]
        %v2159 = vld [vmem:[#allocation2 + $0xb8] sm:$0xf]
        %v2160 = vld [vmem:[#allocation2 + $0xbc] sm:$0xf]
        %v2161 = vld [vmem:[#allocation2 + $0xc0] sm:$0xf]
        %v2162 = vld [vmem:[#allocation2 + $0xc4] sm:$0xf]
        %v2163 = vld [vmem:[#allocation2 + $0xc8] sm:$0xf]
        %v2164 = vld [vmem:[#allocation2 + $0xcc] sm:$0xf]
        %v2165 = vld [vmem:[#allocation2 + $0xd0] sm:$0xf]
        %v2166 = vld [vmem:[#allocation2 + $0xd4] sm:$0xf]
        %v2167 = vld [vmem:[#allocation2 + $0xd8] sm:$0xf]
        %v2168 = vld [vmem:[#allocation2 + $0xdc] sm:$0xf]
        %v2169 = vld [vmem:[#allocation2 + $0xe0] sm:$0xf]
        %v2170 = vld [vmem:[#allocation2 + $0xe4] sm:$0xf]
        %v2171 = vld [vmem:[#allocation2 + $0xe8] sm:$0xf]
        %v2172 = vld [vmem:[#allocation2 + $0xec] sm:$0xf]
        %v2173 = vld [vmem:[#allocation2 + $0xf0] sm:$0xf]
        %v2174 = vld [vmem:[#allocation2 + $0xf4] sm:$0xf]
        %v2175 = vld [vmem:[#allocation2 + $0xf8] sm:$0xf]
        %v2176 = vld [vmem:[#allocation2 + $0xfc] sm:$0xf]
        %v2177 = vld [vmem:[#allocation2 + $0x100] sm:$0xf]
        %v2178 = vld [vmem:[#allocation2 + $0x104] sm:$0xf]
        %v2179 = vld [vmem:[#allocation2 + $0x108] sm:$0xf]
        %v2180 = vld [vmem:[#allocation2 + $0x10c] sm:$0xf]
        %v2181 = vld [vmem:[#allocation2 + $0x110] sm:$0xf]
        %v2182 = vld [vmem:[#allocation2 + $0x114] sm:$0xf]
        %v2183 = vld [vmem:[#allocation2 + $0x118] sm:$0xf]
        %v2184 = vld [vmem:[#allocation2 + $0x11c] sm:$0xf]
        %v2185 = vld [vmem:[#allocation2 + $0x120] sm:$0xf]
        %v2186 = vld [vmem:[#allocation2 + $0x124] sm:$0xf]
        %v2187 = vld [vmem:[#allocation2 + $0x128] sm:$0xf]
        %v2188 = vld [vmem:[#allocation2 + $0x12c] sm:$0xf]
        %v2189 = vld [vmem:[#allocation2 + $0x130] sm:$0xf]
        %v2190 = vld [vmem:[#allocation2 + $0x134] sm:$0xf]
        %v2191 = vld [vmem:[#allocation2 + $0x138] sm:$0xf]
        %v2192 = vld [vmem:[#allocation2 + $0x13c] sm:$0xf]
        %v2193 = vld [vmem:[%s4 + $0x2] sm:$0x1]
        %v2194 = vpack.c.bf16 %v2110, %v2110
        %v2195 = vpack.c.bf16 %v2127, %v2127
        %v2196 = vpack.c.bf16 %v2143, %v2143
        %v2197 = vlaneseq
        %v2198 = vshrl.u32 %v2197, 7
        %v2199 = vsub.s32 0, %v2198
        %v2200 = vrot.slane %v2193, %v2199
        %v2249 = vunpack.c.l.b16 %v2145
        %v2250 = vunpack.c.l.b16 %v2146
        %v2251 = vunpack.c.l.b16 %v2147
        %v2252 = vunpack.c.l.b16 %v2148
        %v2253 = vunpack.c.l.b16 %v2149
        %v2254 = vunpack.c.l.b16 %v2150
        %v2255 = vunpack.c.l.b16 %v2151
        %v2256 = vunpack.c.l.b16 %v2152
        %v2257 = vunpack.c.l.b16 %v2153
        %v2258 = vunpack.c.l.b16 %v2154
        %v2259 = vunpack.c.l.b16 %v2155
        %v2260 = vunpack.c.l.b16 %v2156
        %v2261 = vunpack.c.l.b16 %v2157
        %v2262 = vunpack.c.l.b16 %v2158
        %v2263 = vunpack.c.l.b16 %v2159
        %v2264 = vunpack.c.l.b16 %v2160
        %v2265 = vunpack.c.l.b16 %v2161
        %v2266 = vunpack.c.l.b16 %v2162
        %v2267 = vunpack.c.l.b16 %v2163
        %v2268 = vunpack.c.l.b16 %v2164
        %v2269 = vunpack.c.l.b16 %v2165
        %v2270 = vunpack.c.l.b16 %v2166
        %v2271 = vunpack.c.l.b16 %v2167
        %v2272 = vunpack.c.l.b16 %v2168
        %v2273 = vunpack.c.l.b16 %v2169
        %v2274 = vunpack.c.l.b16 %v2170
        %v2275 = vunpack.c.l.b16 %v2171
        %v2276 = vunpack.c.l.b16 %v2172
        %v2277 = vunpack.c.l.b16 %v2173
        %v2278 = vunpack.c.l.b16 %v2174
        %v2279 = vunpack.c.l.b16 %v2175
        %v2280 = vunpack.c.l.b16 %v2176
        %v2281 = vunpack.c.l.b16 %v2177
        %v2282 = vunpack.c.l.b16 %v2178
        %v2283 = vunpack.c.l.b16 %v2179
        %v2284 = vunpack.c.l.b16 %v2180
        %v2285 = vunpack.c.l.b16 %v2181
        %v2286 = vunpack.c.l.b16 %v2182
        %v2287 = vunpack.c.l.b16 %v2183
        %v2288 = vunpack.c.l.b16 %v2184
        %v2289 = vunpack.c.l.b16 %v2185
        %v2290 = vunpack.c.l.b16 %v2186
        %v2291 = vunpack.c.l.b16 %v2187
        %v2292 = vunpack.c.l.b16 %v2188
        %v2293 = vunpack.c.l.b16 %v2189
        %v2294 = vunpack.c.l.b16 %v2190
        %v2295 = vunpack.c.l.b16 %v2191
        %v2296 = vunpack.c.l.b16 %v2192
        %v2297 = vpack.c.b16 %v2250, %v2249
        %v2298 = vpack.c.b16 %v2252, %v2251
        %v2299 = vpack.c.b16 %v2254, %v2253
        %v2300 = vpack.c.b16 %v2256, %v2255
        %v2301 = vpack.c.b16 %v2258, %v2257
        %v2302 = vpack.c.b16 %v2260, %v2259
        %v2303 = vpack.c.b16 %v2262, %v2261
        %v2304 = vpack.c.b16 %v2264, %v2263
        %v2305 = vpack.c.b16 %v2266, %v2265
        %v2306 = vpack.c.b16 %v2268, %v2267
        %v2307 = vpack.c.b16 %v2270, %v2269
        %v2308 = vpack.c.b16 %v2272, %v2271
        %v2309 = vpack.c.b16 %v2274, %v2273
        %v2310 = vpack.c.b16 %v2276, %v2275
        %v2311 = vpack.c.b16 %v2278, %v2277
        %v2312 = vpack.c.b16 %v2280, %v2279
        %v2313 = vpack.c.b16 %v2282, %v2281
        %v2314 = vpack.c.b16 %v2284, %v2283
        %v2315 = vpack.c.b16 %v2286, %v2285
        %v2316 = vpack.c.b16 %v2288, %v2287
        %v2317 = vpack.c.b16 %v2290, %v2289
        %v2318 = vpack.c.b16 %v2292, %v2291
        %v2319 = vpack.c.b16 %v2294, %v2293
        %v2320 = vpack.c.b16 %v2296, %v2295
        %2345 = vmatprep.subr.bf16.mxu0 0
        %2346 = vmatpush1.bf16.msra.mxu0 %v2297
        %2347 = vmatprep.subr.bf16.mxu0 0
        %2348 = vmatpush1.bf16.msra.mxu0 %v2298
        %2349 = vmatprep.subr.bf16.mxu0 0
        %2350 = vmatpush1.bf16.msra.mxu0 %v2299
        %2351 = vmatprep.subr.bf16.mxu0 0
        %2352 = vmatpush1.bf16.msra.mxu0 %v2300
        %2353 = vmatprep.subr.bf16.mxu0 0
        %2354 = vmatpush1.bf16.msra.mxu0 %v2301
        %2355 = vmatprep.subr.bf16.mxu0 0
        %2356 = vmatpush1.bf16.msra.mxu0 %v2302
        %2357 = vmatprep.subr.bf16.mxu0 0
        %2358 = vmatpush1.bf16.msra.mxu0 %v2303
        %2359 = vmatprep.subr.bf16.mxu0 0
        %2360 = vmatpush1.bf16.msra.mxu0 %v2304
        %2361 = vmatprep.subr.bf16.mxu0 0
        %2362 = vmatpush1.bf16.msra.mxu0 %v2305
        %2363 = vmatprep.subr.bf16.mxu0 0
        %2364 = vmatpush1.bf16.msra.mxu0 %v2306
        %2365 = vmatprep.subr.bf16.mxu0 0
        %2366 = vmatpush1.bf16.msra.mxu0 %v2307
        %2367 = vmatprep.subr.bf16.mxu0 0
        %2368 = vmatpush1.bf16.msra.mxu0 %v2308
        %2369 = vmatprep.subr.bf16.mxu0 0
        %2370 = vmatpush1.bf16.msra.mxu0 %v2309
        %2371 = vmatprep.subr.bf16.mxu0 0
        %2372 = vmatpush1.bf16.msra.mxu0 %v2310
        %2373 = vmatprep.subr.bf16.mxu0 0
        %2374 = vmatpush1.bf16.msra.mxu0 %v2311
        %2375 = vmatprep.subr.bf16.mxu0 0
        %2376 = vmatpush1.bf16.msra.mxu0 %v2312
        %2377 = vmatprep.mubr.bf16.mxu0 %v2195
        %2378 = vmatmul.mubr.bf16.gmra.mrb[0].mxu0 %v2194
        %v2379 = vpop.f32.mrb[0].mxu0
        %v2380 = vadd.f32 %v2200, %v2379
        %v2381 = vpop.f32.mrb[0].mxu0
        %v2382 = vpop.f32.mrb[0].mxu0
        %v2383 = vpop.f32.mrb[0].mxu0
        %2384 = vdwg.mxu0
        %2385 = vmatprep.subr.bf16.mxu0 0
        %2386 = vmatpush1.bf16.msra.mxu0 %v2313
        %2387 = vmatprep.subr.bf16.mxu0 0
        %2388 = vmatpush1.bf16.msra.mxu0 %v2314
        %2389 = vmatprep.subr.bf16.mxu0 0
        %2390 = vmatpush1.bf16.msra.mxu0 %v2315
        %2391 = vmatprep.subr.bf16.mxu0 0
        %2392 = vmatpush1.bf16.msra.mxu0 %v2316
        %2393 = vmatprep.subr.bf16.mxu0 0
        %2394 = vmatpush1.bf16.msra.mxu0 %v2317
        %2395 = vmatprep.subr.bf16.mxu0 0
        %2396 = vmatpush1.bf16.msra.mxu0 %v2318
        %2397 = vmatprep.subr.bf16.mxu0 0
        %2398 = vmatpush1.bf16.msra.mxu0 %v2319
        %2399 = vmatprep.subr.bf16.mxu0 0
        %2400 = vmatpush1.bf16.msra.mxu0 %v2320
        %2401 = vmatprep.subr.bf16.mxu0 0
        %2402 = vmatpush1.bf16.msra.mxu0 0
        %2403 = vmatprep.subr.bf16.mxu0 0
        %2404 = vmatpush1.bf16.msra.mxu0 0
        %2405 = vmatprep.subr.bf16.mxu0 0
        %2406 = vmatpush1.bf16.msra.mxu0 0
        %2407 = vmatprep.subr.bf16.mxu0 0
        %2408 = vmatpush1.bf16.msra.mxu0 0
        %2409 = vmatprep.subr.bf16.mxu0 0
        %2410 = vmatpush1.bf16.msra.mxu0 0
        %2411 = vmatprep.subr.bf16.mxu0 0
        %2412 = vmatpush1.bf16.msra.mxu0 0
        %2413 = vmatprep.subr.bf16.mxu0 0
        %2414 = vmatpush1.bf16.msra.mxu0 0
        %2415 = vmatprep.subr.bf16.mxu0 0
        %2416 = vmatpush1.bf16.msra.mxu0 0
        %2417 = vmatprep.mubr.bf16.mxu0 0
        %2418 = vmatmul.mubr.bf16.gmra.mrb[0].mxu0 %v2196
        %v2419 = vpop.f32.mrb[0].mxu0
        %v2420 = vadd.f32 %v2380, %v2419
        %v2421 = vpop.f32.mrb[0].mxu0
        %v2422 = vpop.f32.mrb[0].mxu0
        %v2423 = vpop.f32.mrb[0].mxu0
        %2424 = vdwg.mxu0
        %v2425 = vmax.f32 %v2420, 0.0
        %v2426 = vld [vmem:[#allocation2 + $0x140] sm:$0xf]
        %v2427 = vld [vmem:[#allocation2 + $0x144] sm:$0xf]
        %v2428 = vld [vmem:[#allocation2 + $0x148] sm:$0xf]
        %v2429 = vld [vmem:[#allocation2 + $0x14c] sm:$0xf]
        %v2430 = vld [vmem:[#allocation2 + $0x150] sm:$0xf]
        %v2431 = vld [vmem:[#allocation2 + $0x154] sm:$0xf]
        %v2432 = vld [vmem:[#allocation2 + $0x158] sm:$0xf]
        %v2433 = vld [vmem:[#allocation2 + $0x15c] sm:$0xf]
        %v2434 = vld [vmem:[#allocation2 + $0x160] sm:$0xf]
        %v2435 = vld [vmem:[#allocation2 + $0x164] sm:$0xf]
        %v2436 = vld [vmem:[#allocation2 + $0x168] sm:$0xf]
        %v2437 = vld [vmem:[#allocation2 + $0x16c] sm:$0xf]
        %v2438 = vld [vmem:[#allocation2 + $0x170] sm:$0xf]
        %v2439 = vld [vmem:[#allocation2 + $0x174] sm:$0xf]
        %v2440 = vld [vmem:[#allocation2 + $0x178] sm:$0xf]
        %v2441 = vld [vmem:[#allocation2 + $0x17c] sm:$0xf]
        %v2442 = vld [vmem:[%s4 + $0x3] sm:$0x1]
        %v2443 = vpack.c.bf16 %v2425, %v2425
        %v2444 = vlaneseq
        %v2445 = vshrl.u32 %v2444, 7
        %v2446 = vsub.s32 0, %v2445
        %v2447 = vrot.slane %v2442, %v2446
        %v2464 = vunpack.c.l.b16 %v2426
        %v2465 = vunpack.c.l.b16 %v2427
        %v2466 = vunpack.c.l.b16 %v2428
        %v2467 = vunpack.c.l.b16 %v2429
        %v2468 = vunpack.c.l.b16 %v2430
        %v2469 = vunpack.c.l.b16 %v2431
        %v2470 = vunpack.c.l.b16 %v2432
        %v2471 = vunpack.c.l.b16 %v2433
        %v2472 = vunpack.c.l.b16 %v2434
        %v2473 = vunpack.c.l.b16 %v2435
        %v2474 = vunpack.c.l.b16 %v2436
        %v2475 = vunpack.c.l.b16 %v2437
        %v2476 = vunpack.c.l.b16 %v2438
        %v2477 = vunpack.c.l.b16 %v2439
        %v2478 = vunpack.c.l.b16 %v2440
        %v2479 = vunpack.c.l.b16 %v2441
        %v2480 = vpack.c.b16 %v2465, %v2464
        %v2481 = vpack.c.b16 %v2467, %v2466
        %v2482 = vpack.c.b16 %v2469, %v2468
        %v2483 = vpack.c.b16 %v2471, %v2470
        %v2484 = vpack.c.b16 %v2473, %v2472
        %v2485 = vpack.c.b16 %v2475, %v2474
        %v2486 = vpack.c.b16 %v2477, %v2476
        %v2487 = vpack.c.b16 %v2479, %v2478
        %2496 = vmatprep.subr.bf16.mxu0 0
        %2497 = vmatpush1.bf16.msra.mxu0 %v2480
        %2498 = vmatprep.subr.bf16.mxu0 0
        %2499 = vmatpush1.bf16.msra.mxu0 %v2481
        %2500 = vmatprep.subr.bf16.mxu0 0
        %2501 = vmatpush1.bf16.msra.mxu0 %v2482
        %2502 = vmatprep.subr.bf16.mxu0 0
        %2503 = vmatpush1.bf16.msra.mxu0 %v2483
        %2504 = vmatprep.subr.bf16.mxu0 0
        %2505 = vmatpush1.bf16.msra.mxu0 %v2484
        %2506 = vmatprep.subr.bf16.mxu0 0
        %2507 = vmatpush1.bf16.msra.mxu0 %v2485
        %2508 = vmatprep.subr.bf16.mxu0 0
        %2509 = vmatpush1.bf16.msra.mxu0 %v2486
        %2510 = vmatprep.subr.bf16.mxu0 0
        %2511 = vmatpush1.bf16.msra.mxu0 %v2487
        %2512 = vmatprep.subr.bf16.mxu0 0
        %2513 = vmatpush1.bf16.msra.mxu0 0
        %2514 = vmatprep.subr.bf16.mxu0 0
        %2515 = vmatpush1.bf16.msra.mxu0 0
        %2516 = vmatprep.subr.bf16.mxu0 0
        %2517 = vmatpush1.bf16.msra.mxu0 0
        %2518 = vmatprep.subr.bf16.mxu0 0
        %2519 = vmatpush1.bf16.msra.mxu0 0
        %2520 = vmatprep.subr.bf16.mxu0 0
        %2521 = vmatpush1.bf16.msra.mxu0 0
        %2522 = vmatprep.subr.bf16.mxu0 0
        %2523 = vmatpush1.bf16.msra.mxu0 0
        %2524 = vmatprep.subr.bf16.mxu0 0
        %2525 = vmatpush1.bf16.msra.mxu0 0
        %2526 = vmatprep.subr.bf16.mxu0 0
        %2527 = vmatpush1.bf16.msra.mxu0 0
        %2528 = vmatprep.mubr.bf16.mxu0 0
        %2529 = vmatmul.mubr.bf16.gmra.mrb[0].mxu0 %v2443
        %v2530 = vpop.f32.mrb[0].mxu0
        %v2531 = vadd.f32 %v2447, %v2530
        %v2532 = vpop.f32.mrb[0].mxu0
        %v2533 = vpop.f32.mrb[0].mxu0
        %v2534 = vpop.f32.mrb[0].mxu0
        %2535 = vdwg.mxu0
        %v2536 = vmax.f32 %v2531, 0.0
        %2537 = vst [vmem:[%s302] sm:$0xff] %v2536
        %s2538 = sand.u32 %s153, 1
        %s2539 = scalar_lea.sflag [#allocation4], %s2538
        %s2540 = sand.u32 %s153, 1
        %s2541 = smul.addr %s2540, 8
        %s2542 = scalar_lea.vmem [#allocation5], %s2541
        %s2543 = sand.u32 %s179, 1
        %s2544 = scalar_lea.sflag [#allocation7], %s2543
        %s2545 = sand.u32 %s179, 1
        %s2546 = smul.addr %s2545, 8
        %s2547 = scalar_lea.vmem [#allocation6], %s2546
        // Predicated region
        $region45: #{tpu_custom_call.1} parent=39 // pred_check
          %p2548 = pneg %p163
        $region46: #{tpu_custom_call.1} parent=39 // pred_check_branch
          %2550 = sbr.rel (%p2548) target = $region48
        $region47: #{tpu_custom_call.1} parent=39 // pred_region
          %s2552 = ssub.s32 128, 128
          %2553 = vsyncadd %s2539, %s2552
          %s2554 = smul.addr %s25, 128
          %s2555 = scalar_lea.hbm %s5, %s2554
          %s2557 = sshll.u32 %s2542, 4
          %s2558 = int_to_ptr.vmem [resolvable:$true] %s2557
          %2560 = dma.vmem_to_hbm [thread:$0]  %s2558, 128, %s2555, %s2539
        $region48: #{tpu_custom_call.1} parent=39 // pred_fallthru
          _
        // Predicated region
        $region49: #{tpu_custom_call.1} parent=39 // pred_check
          %p2561 = pneg %p189
        $region50: #{tpu_custom_call.1} parent=39 // pred_check_branch
          %2563 = sbr.rel (%p2561) target = $region52
        $region51: #{tpu_custom_call.1} parent=39 // pred_region
          %s2565 = ssub.s32 128, 128
          %2566 = vsyncadd %s2544, %s2565
          %s2567 = smul.addr %s25, 128
          %s2568 = scalar_lea.hbm %s6, %s2567
          %s2570 = sshll.u32 %s2547, 4
          %s2571 = int_to_ptr.vmem [resolvable:$true] %s2570
          %2573 = dma.vmem_to_hbm [thread:$0]  %s2571, 128, %s2568, %s2544
        $region52: #{tpu_custom_call.1} parent=39 // pred_fallthru
          _
      $region40: #{tpu_custom_call.1} parent=5 // pred_fallthru
        _
      %p2574 = scmp.le.s32.totalorder 2, %s20
      // Predicated region
      $region53: #{tpu_custom_call.1} parent=5 // pred_check
        %p2575 = pneg %p2574
      $region54: #{tpu_custom_call.1} parent=5 // pred_check_branch
        %2577 = sbr.rel (%p2575) target = $region56
      $region55: #{tpu_custom_call.1} parent=5 // pred_region
        %s2578 = ssub.s32 %s20, 2
        // Predicated region
        $region57: #{tpu_custom_call.1} parent=55 // pred_check
          %p2579 = pneg %p169
        $region58: #{tpu_custom_call.1} parent=55 // pred_check_branch
          %2581 = sbr.rel (%p2579) target = $region60
        $region59: #{tpu_custom_call.1} parent=55 // pred_region
          %s2582 = sand.u32 %s154, 1
          %s2583 = scalar_lea.sflag [#allocation4], %s2582
          %s2584 = sand.u32 %s154, 1
          %s2585 = smul.addr %s2584, 8
          %s2586 = scalar_lea.vmem [#allocation5], %s2585
          %2587 = dma.done %s2583, 128
        $region60: #{tpu_custom_call.1} parent=55 // pred_fallthru
          _
        // Predicated region
        $region61: #{tpu_custom_call.1} parent=55 // pred_check
          %p2588 = pneg %p195
        $region62: #{tpu_custom_call.1} parent=55 // pred_check_branch
          %2590 = sbr.rel (%p2588) target = $region64
        $region63: #{tpu_custom_call.1} parent=55 // pred_region
          %s2591 = sand.u32 %s180, 1
          %s2592 = scalar_lea.sflag [#allocation7], %s2591
          %s2593 = sand.u32 %s180, 1
          %s2594 = smul.addr %s2593, 8
          %s2595 = scalar_lea.vmem [#allocation6], %s2594
          %2596 = dma.done %s2592, 128
        $region64: #{tpu_custom_call.1} parent=55 // pred_fallthru
          _
      $region56: #{tpu_custom_call.1} parent=5 // pred_fallthru
        _
    $region6: #{tpu_custom_call.1} parent=1 // loop_footer
      %s24 = sadd.s32 1, %s20
    $region7: #{tpu_custom_call.1} parent=1 // loop_footer_branch
      %19 = sbr.rel target = $region3
    $region8: #{tpu_custom_call.1} parent=1 // loop_exit
      _
    %2597 = vsyncpa [#allocation3], 1
    %s2598 = scalar_lea.sflag [#allocation3], 1
    %2599 = vsyncpa %s2598, 1
    %2600 = vsyncpa [#allocation4], 1
    %s2601 = scalar_lea.sflag [#allocation4], 1
    %2602 = vsyncpa %s2601, 1
    %2603 = vsyncpa [#allocation7], 1
    %s2604 = scalar_lea.sflag [#allocation7], 1
    %2605 = vsyncpa %s2604, 1

</llo_original>
